<compile_context>
chip_gen: v5e
topology: v5e:2x2
jax: 0.10.0
libtpu: 0.0.40
codegen_flags: <defaults>
</compile_context>

<pallas_src>
import math

import jax
import jax.numpy as jnp
from jax import lax
from jax.experimental import pallas as pl
from jax.experimental.pallas import tpu as pltpu

# ----------------------------- configuration (scaled-down) -----------------------------
CLASSES = 10
CPAD = 128                            # lane-dense padded logit width
RESOLUTIONS = [8, 4]                  # analog of [32, 16, 8, 4]
SIZE = 16                             # analog of 224
IN_CH = 3 * len(RESOLUTIONS)          # multichannel_fn output channels
FEAT = 128                            # analog of 2048 (pre-fc feature width)
EPS = 1e-5

# surrogate backbone blocks: (c_in, c_out, stride); last block keeps 2x2 spatial (like ResNet's 7x7)
BLOCK_CFG = [(16, 32, 1), (32, 32, 1), (32, 64, 2), (64, 128, 1), (128, 128, 1)]

# flattened feature dims feeding each head: [input, stem, block1..5, avgpool, fc]
ALL_DIMS = [IN_CH * SIZE * SIZE, 256, 512, 512, 256, 512, 512, 128, CLASSES]

# scaled analogs of the hard-coded index lists
STACK_HEAD_KEYS = [3, 4, 5, 6, 7]                     # analog of [20,30,35,40,45,50,52]
HEAD_DIMS = [ALL_DIMS[k] for k in STACK_HEAD_KEYS]    # [512, 256, 512, 512, 128]
F_HEADS = sum(HEAD_DIMS)                              # 1920
F_TOTAL = F_HEADS + FEAT                              # 2048 (fc weight segment appended)
N_STACK = len(STACK_HEAD_KEYS) + 1                    # heads + raw imported-model logits


# ----------------------------- fused Pallas kernel -----------------------------
def _full_spec(shape):
    nd = len(shape)
    return pl.BlockSpec(shape, lambda i, _nd=nd: (0,) * _nd)


def _make_fused_kernel(B, head_dims, inv_b, inv_stack):
    """Builds the kernel: sum_h( BN_h(x_h) @ W_h ) + x_avg @ W_fc + bias_sum, scaled by 1/N_STACK."""
    n_heads = len(head_dims)

    def kernel(*refs):
        tap_refs = refs[:n_heads]
        g_ref, bt_ref, w_ref, bias_ref, o_ref = refs[n_heads:]

        acc = jnp.zeros((B, CPAD), jnp.float32)
        off = 0
        for x_ref, fh in zip(tap_refs, head_dims):
            x = x_ref[...]                                          # [B, fh] f32
            # two-pass training-mode BatchNorm1d batch stats (biased variance, batch never tiled)
            mean = jnp.sum(x, axis=0, keepdims=True) * inv_b        # [1, fh]
            xc = x - mean
            var = jnp.sum(xc * xc, axis=0, keepdims=True) * inv_b
            scale = g_ref[:, off:off + fh] * lax.rsqrt(var + EPS)   # static slice -> free view
            x_hat = xc * scale + bt_ref[:, off:off + fh]
            acc = acc + jnp.dot(x_hat.astype(jnp.bfloat16),
                                w_ref[off:off + fh, :],
                                preferred_element_type=jnp.float32)
            off += fh

        # backbone fc (no BN): reuse the avgpool tap against the appended fc weight segment
        fc_x = tap_refs[-1][...]                                    # [B, FEAT] f32
        acc = acc + jnp.dot(fc_x.astype(jnp.bfloat16),
                            w_ref[off:off + FEAT, :],
                            preferred_element_type=jnp.float32)

        # fold summed biases (heads + fc) and the mean over the stack into the single store
        o_ref[...] = (acc + bias_ref[...]) * inv_stack

    return kernel


def pallas_fused_stacked_heads(feats, fused):
    """feats: dict key->[B, F_h] flattened backbone taps; fused: init-time cached constants."""
    taps = [feats[k].astype(jnp.float32) for k in STACK_HEAD_KEYS]
    B = taps[0].shape[0]

    kernel = _make_fused_kernel(B, HEAD_DIMS, 1.0 / float(B), 1.0 / float(N_STACK))
    ins = taps + [fused["gamma"], fused["beta"], fused["w"], fused["bias"]]

    out = pl.pallas_call(
        kernel,
        out_shape=jax.ShapeDtypeStruct((B, CPAD), jnp.float32),
        grid_spec=pltpu.PrefetchScalarGridSpec(
            num_scalar_prefetch=0,
            grid=(1,),
            in_specs=[_full_spec(t.shape) for t in ins],
            out_specs=pl.BlockSpec((B, CPAD), lambda i: (0, 0)),
        ),
        compiler_params=pltpu.CompilerParams(dimension_semantics=("arbitrary",)),
    )(*ins)
    return out[:, :CLASSES]


# ----------------------------- plain-JAX glue (prepare_input + surrogate backbone) -----------------------------
def _multichannel_fn(x):
    B, C, H, W = x.shape
    parts = []
    for r in RESOLUTIONS:
        xr = jax.image.resize(x, (B, C, r, r), method="linear")
        xr = jax.image.resize(xr, (B, C, H, W), method="nearest")
        parts.append(xr)
    return jnp.concatenate(parts, axis=1)


def _prepare_input(x):
    x = _multichannel_fn(x)
    B, C, _, _ = x.shape
    x = jax.image.resize(x, (B, C, SIZE, SIZE), method="cubic")   # bicubic analog of F.interpolate
    mean = jnp.array([0.485, 0.456, 0.406] * (C // 3), jnp.float32).reshape(1, -1, 1, 1)
    std = jnp.array([0.229, 0.224, 0.225] * (C // 3), jnp.float32).reshape(1, -1, 1, 1)
    return (x - mean) / std


def _conv2d(x, w, stride=1):
    return lax.conv_general_dilated(
        x, w, window_strides=(stride, stride), padding=((1, 1), (1, 1)),
        dimension_numbers=("NCHW", "OIHW", "NCHW"))


def _bn2d(x, gamma, beta):
    mean = jnp.mean(x, axis=(0, 2, 3), keepdims=True)
    var = jnp.var(x, axis=(0, 2, 3), keepdims=True)
    return (x - mean) * lax.rsqrt(var + EPS) * gamma.reshape(1, -1, 1, 1) + beta.reshape(1, -1, 1, 1)


def _maxpool2(x):
    return lax.reduce_window(x, -jnp.inf, lax.max, (1, 1, 2, 2), (1, 1, 2, 2), "VALID")


def _backbone_taps(params, xp):
    """Single backbone walk (stem + blocks + avgpool), collecting the flattened taps that feed the
    stacked heads.  The avgpool tap doubles as the fc input (fc is folded into the fused kernel)."""
    feats = {}
    p = params["stem"]
    h = _conv2d(xp, p["w"], stride=2)
    h = jax.nn.relu(_bn2d(h, p["g"], p["b"]))
    h = _maxpool2(h)
    for i, (bp, (_ci, _co, s)) in enumerate(zip(params["blocks"], BLOCK_CFG)):
        y = _conv2d(h, bp["w"], stride=s)
        y = jax.nn.relu(_bn2d(y, bp["g"], bp["b"]))
        if y.shape == h.shape:
            y = y + h
        h = y
        key = i + 2                                  # op index l = i+1 -> feats key l+1
        if key in STACK_HEAD_KEYS:
            feats[key] = h.reshape(h.shape[0], -1)
    feats[7] = jnp.mean(h, axis=(2, 3))              # avgpool -> [B, FEAT]; also the fc input
    return feats


# ----------------------------- SourceModel forward -----------------------------
def source_model_forward(params, x):
    """forward == get_logits_from_several_layers: BN+Linear heads on backbone taps, stacked with the
    full imported-model output, mean over the stack.  Heads whose logits never reach the output
    (scaled analogs of taps 1/5/10) are skipped -- the returned value is identical to the spec."""
    xp = _prepare_input(x)
    feats = _backbone_taps(params, xp)
    return pallas_fused_stacked_heads(feats, params["fused"])     # [B, CLASSES]


# ----------------------------- deterministic parameter init -----------------------------
def init_params(key):
    keys = iter(jax.random.split(key, 64))

    def nrm(shape, scale):
        return scale * jax.random.normal(next(keys), shape, dtype=jnp.float32)

    def conv_block(cin, cout):
        return dict(w=nrm((cout, cin, 3, 3), 1.0 / math.sqrt(cin * 9)),
                    g=jnp.ones((cout,), jnp.float32),
                    b=jnp.zeros((cout,), jnp.float32))

    params = dict(
        stem=conv_block(IN_CH, 16),
        blocks=[conv_block(cin, cout) for (cin, cout, _s) in BLOCK_CFG],
        fc=dict(w=nrm((FEAT, CLASSES), 1.0 / math.sqrt(FEAT)),
                b=jnp.zeros((CLASSES,), jnp.float32)),
        heads={},
    )
    for i, f in enumerate(ALL_DIMS):                       # one BatchNormLinear head per all_dims entry
        params["heads"][f"head{i}"] = dict(
            gamma=jnp.ones((f,), jnp.float32),             # BatchNorm1d default init
            beta=jnp.zeros((f,), jnp.float32),
            w=nrm((f, CLASSES), 1.0 / math.sqrt(f)),       # Linear weight stored [F, C]
            b=nrm((CLASSES,), 1.0 / math.sqrt(f)),
        )

    # ---- init-time cached fused-kernel constants (hoisted out of the forward) ----
    heads = [params["heads"][f"head{k}"] for k in STACK_HEAD_KEYS]
    gamma = jnp.concatenate([h["gamma"] for h in heads]).reshape(1, F_HEADS).astype(jnp.float32)
    beta = jnp.concatenate([h["beta"] for h in heads]).reshape(1, F_HEADS).astype(jnp.float32)
    w_all = jnp.concatenate([h["w"] for h in heads] + [params["fc"]["w"]], axis=0)   # [F_TOTAL, C]
    # TODO(synk): at real scale keep the HBM weight at [F_TOTAL, CLASSES] (pad to 128 lanes only in
    #             the epilogue) to avoid the ~12.8x weight-stream inflation; neutral at toy scale.
    w_pad = jnp.zeros((F_TOTAL, CPAD), jnp.bfloat16).at[:, :CLASSES].set(w_all.astype(jnp.bfloat16))
    b_sum = jnp.sum(jnp.stack([h["b"] for h in heads] + [params["fc"]["b"]]), axis=0)
    bias_pad = jnp.zeros((1, CPAD), jnp.float32).at[0, :CLASSES].set(b_sum.astype(jnp.float32))
    params["fused"] = dict(gamma=gamma, beta=beta, w=w_pad, bias=bias_pad)
    return params


# ----------------------------- main -----------------------------
if __name__ == "__main__":
    root = jax.random.PRNGKey(0)
    kx, kp = jax.random.split(root)
    x = jax.random.normal(kx, (2, 3, 16, 16), dtype=jnp.float32)   # small NCHW input
    params = init_params(kp)

    fwd = jax.jit(source_model_forward)
    out = fwd(params, x)
    jax.block_until_ready(out)
    assert out.shape == (2, CLASSES) and out.dtype == jnp.float32
    assert bool(jnp.all(jnp.isfinite(out)))
    print("KERNEL_OK")
</pallas_src>

<mosaic_0001>
module attributes {stable_mosaic.version = 11 : i64} {
  func.func @kernel(%arg0: i32, %arg1: memref<2x512xf32, #tpu.memory_space<vmem>>, %arg2: memref<2x256xf32, #tpu.memory_space<vmem>>, %arg3: memref<2x512xf32, #tpu.memory_space<vmem>>, %arg4: memref<2x512xf32, #tpu.memory_space<vmem>>, %arg5: memref<2x128xf32, #tpu.memory_space<vmem>>, %arg6: memref<1x1920xf32, #tpu.memory_space<vmem>>, %arg7: memref<1x1920xf32, #tpu.memory_space<vmem>>, %arg8: memref<2048x128xbf16, #tpu.memory_space<vmem>>, %arg9: memref<1x128xf32, #tpu.memory_space<vmem>>, %arg10: memref<2x128xf32, #tpu.memory_space<vmem>>) attributes {dimension_semantics = [#tpu.dimension_semantics<arbitrary>], iteration_bounds = array<i64: 1>, scalar_prefetch = 0 : i64, scratch_operands = 0 : i64, tpu.core_type = #tpu.core_type<tc>, window_params = [{pipeline_mode = #tpu.pipeline_mode<synchronous>, transform_indices = @transform_0, window_bounds = array<i64: 2, 512>}, {pipeline_mode = #tpu.pipeline_mode<synchronous>, transform_indices = @transform_1, window_bounds = array<i64: 2, 256>}, {pipeline_mode = #tpu.pipeline_mode<synchronous>, transform_indices = @transform_2, window_bounds = array<i64: 2, 512>}, {pipeline_mode = #tpu.pipeline_mode<synchronous>, transform_indices = @transform_3, window_bounds = array<i64: 2, 512>}, {pipeline_mode = #tpu.pipeline_mode<synchronous>, transform_indices = @transform_4, window_bounds = array<i64: 2, 128>}, {pipeline_mode = #tpu.pipeline_mode<synchronous>, transform_indices = @transform_5, window_bounds = array<i64: 1, 1920>}, {pipeline_mode = #tpu.pipeline_mode<synchronous>, transform_indices = @transform_6, window_bounds = array<i64: 1, 1920>}, {pipeline_mode = #tpu.pipeline_mode<synchronous>, transform_indices = @transform_7, window_bounds = array<i64: 2048, 128>}, {pipeline_mode = #tpu.pipeline_mode<synchronous>, transform_indices = @transform_8, window_bounds = array<i64: 1, 128>}, {pipeline_mode = #tpu.pipeline_mode<synchronous>, transform_indices = @transform_9, window_bounds = array<i64: 2, 128>}]} {
    %cst = arith.constant 0.000000e+00 : f32
    %0 = vector.broadcast %cst : f32 to vector<2x128xf32>
    %c0 = arith.constant 0 : index
    %c0_0 = arith.constant 0 : index
    %1 = vector.load %arg1[%c0, %c0_0] : memref<2x512xf32, #tpu.memory_space<vmem>>, vector<2x512xf32>
    %cst_1 = arith.constant dense<0.000000e+00> : vector<512xf32>
    %2 = vector.multi_reduction <add>, %1, %cst_1 [0] : vector<2x512xf32> to vector<512xf32>
    %3 = vector.shape_cast %2 : vector<512xf32> to vector<1x512xf32>
    %cst_2 = arith.constant 5.000000e-01 : f32
    %4 = vector.broadcast %cst_2 : f32 to vector<1x512xf32>
    %5 = arith.mulf %3, %4 : vector<1x512xf32>
    %6 = vector.broadcast %5 : vector<1x512xf32> to vector<2x512xf32>
    %7 = arith.subf %1, %6 : vector<2x512xf32>
    %8 = arith.mulf %7, %7 : vector<2x512xf32>
    %cst_3 = arith.constant dense<0.000000e+00> : vector<512xf32>
    %9 = vector.multi_reduction <add>, %8, %cst_3 [0] : vector<2x512xf32> to vector<512xf32>
    %10 = vector.shape_cast %9 : vector<512xf32> to vector<1x512xf32>
    %cst_4 = arith.constant 5.000000e-01 : f32
    %11 = vector.broadcast %cst_4 : f32 to vector<1x512xf32>
    %12 = arith.mulf %10, %11 : vector<1x512xf32>
    %c0_5 = arith.constant 0 : index
    %c0_6 = arith.constant 0 : index
    %13 = vector.load %arg6[%c0_5, %c0_6] : memref<1x1920xf32, #tpu.memory_space<vmem>>, vector<1x512xf32>
    %cst_7 = arith.constant 9.99999974E-6 : f32
    %14 = vector.broadcast %cst_7 : f32 to vector<1x512xf32>
    %15 = arith.addf %12, %14 : vector<1x512xf32>
    %16 = math.rsqrt %15 : vector<1x512xf32>
    %17 = arith.mulf %13, %16 : vector<1x512xf32>
    %18 = vector.broadcast %17 : vector<1x512xf32> to vector<2x512xf32>
    %19 = arith.mulf %7, %18 : vector<2x512xf32>
    %c0_8 = arith.constant 0 : index
    %c0_9 = arith.constant 0 : index
    %20 = vector.load %arg7[%c0_8, %c0_9] : memref<1x1920xf32, #tpu.memory_space<vmem>>, vector<1x512xf32>
    %21 = vector.broadcast %20 : vector<1x512xf32> to vector<2x512xf32>
    %22 = arith.addf %19, %21 : vector<2x512xf32>
    %23 = arith.truncf %22 : vector<2x512xf32> to vector<2x512xbf16>
    %c0_10 = arith.constant 0 : index
    %c0_11 = arith.constant 0 : index
    %24 = vector.load %arg8[%c0_10, %c0_11] : memref<2048x128xbf16, #tpu.memory_space<vmem>>, vector<512x128xbf16>
    %cst_12 = arith.constant dense<0.000000e+00> : vector<2x128xf32>
    %25 = tpu.matmul %23, %24, %cst_12 {dimension_numbers = #tpu.dot_dimension_numbers<[1], [0], [0], [1], [0, 0, 1, 1], [], []>} : vector<2x512xbf16>, vector<512x128xbf16>, vector<2x128xf32> -> vector<2x128xf32>
    %26 = arith.addf %0, %25 : vector<2x128xf32>
    %c0_13 = arith.constant 0 : index
    %c0_14 = arith.constant 0 : index
    %27 = vector.load %arg2[%c0_13, %c0_14] : memref<2x256xf32, #tpu.memory_space<vmem>>, vector<2x256xf32>
    %cst_15 = arith.constant dense<0.000000e+00> : vector<256xf32>
    %28 = vector.multi_reduction <add>, %27, %cst_15 [0] : vector<2x256xf32> to vector<256xf32>
    %29 = vector.shape_cast %28 : vector<256xf32> to vector<1x256xf32>
    %cst_16 = arith.constant 5.000000e-01 : f32
    %30 = vector.broadcast %cst_16 : f32 to vector<1x256xf32>
    %31 = arith.mulf %29, %30 : vector<1x256xf32>
    %32 = vector.broadcast %31 : vector<1x256xf32> to vector<2x256xf32>
    %33 = arith.subf %27, %32 : vector<2x256xf32>
    %34 = arith.mulf %33, %33 : vector<2x256xf32>
    %cst_17 = arith.constant dense<0.000000e+00> : vector<256xf32>
    %35 = vector.multi_reduction <add>, %34, %cst_17 [0] : vector<2x256xf32> to vector<256xf32>
    %36 = vector.shape_cast %35 : vector<256xf32> to vector<1x256xf32>
    %cst_18 = arith.constant 5.000000e-01 : f32
    %37 = vector.broadcast %cst_18 : f32 to vector<1x256xf32>
    %38 = arith.mulf %36, %37 : vector<1x256xf32>
    %c0_19 = arith.constant 0 : index
    %c512 = arith.constant 512 : index
    %39 = vector.load %arg6[%c0_19, %c512] : memref<1x1920xf32, #tpu.memory_space<vmem>>, vector<1x256xf32>
    %cst_20 = arith.constant 9.99999974E-6 : f32
    %40 = vector.broadcast %cst_20 : f32 to vector<1x256xf32>
    %41 = arith.addf %38, %40 : vector<1x256xf32>
    %42 = math.rsqrt %41 : vector<1x256xf32>
    %43 = arith.mulf %39, %42 : vector<1x256xf32>
    %44 = vector.broadcast %43 : vector<1x256xf32> to vector<2x256xf32>
    %45 = arith.mulf %33, %44 : vector<2x256xf32>
    %c0_21 = arith.constant 0 : index
    %c512_22 = arith.constant 512 : index
    %46 = vector.load %arg7[%c0_21, %c512_22] : memref<1x1920xf32, #tpu.memory_space<vmem>>, vector<1x256xf32>
    %47 = vector.broadcast %46 : vector<1x256xf32> to vector<2x256xf32>
    %48 = arith.addf %45, %47 : vector<2x256xf32>
    %49 = arith.truncf %48 : vector<2x256xf32> to vector<2x256xbf16>
    %c512_23 = arith.constant 512 : index
    %c0_24 = arith.constant 0 : index
    %50 = vector.load %arg8[%c512_23, %c0_24] : memref<2048x128xbf16, #tpu.memory_space<vmem>>, vector<256x128xbf16>
    %cst_25 = arith.constant dense<0.000000e+00> : vector<2x128xf32>
    %51 = tpu.matmul %49, %50, %cst_25 {dimension_numbers = #tpu.dot_dimension_numbers<[1], [0], [0], [1], [0, 0, 1, 1], [], []>} : vector<2x256xbf16>, vector<256x128xbf16>, vector<2x128xf32> -> vector<2x128xf32>
    %52 = arith.addf %26, %51 : vector<2x128xf32>
    %c0_26 = arith.constant 0 : index
    %c0_27 = arith.constant 0 : index
    %53 = vector.load %arg3[%c0_26, %c0_27] : memref<2x512xf32, #tpu.memory_space<vmem>>, vector<2x512xf32>
    %cst_28 = arith.constant dense<0.000000e+00> : vector<512xf32>
    %54 = vector.multi_reduction <add>, %53, %cst_28 [0] : vector<2x512xf32> to vector<512xf32>
    %55 = vector.shape_cast %54 : vector<512xf32> to vector<1x512xf32>
    %cst_29 = arith.constant 5.000000e-01 : f32
    %56 = vector.broadcast %cst_29 : f32 to vector<1x512xf32>
    %57 = arith.mulf %55, %56 : vector<1x512xf32>
    %58 = vector.broadcast %57 : vector<1x512xf32> to vector<2x512xf32>
    %59 = arith.subf %53, %58 : vector<2x512xf32>
    %60 = arith.mulf %59, %59 : vector<2x512xf32>
    %cst_30 = arith.constant dense<0.000000e+00> : vector<512xf32>
    %61 = vector.multi_reduction <add>, %60, %cst_30 [0] : vector<2x512xf32> to vector<512xf32>
    %62 = vector.shape_cast %61 : vector<512xf32> to vector<1x512xf32>
    %cst_31 = arith.constant 5.000000e-01 : f32
    %63 = vector.broadcast %cst_31 : f32 to vector<1x512xf32>
    %64 = arith.mulf %62, %63 : vector<1x512xf32>
    %c0_32 = arith.constant 0 : index
    %c768 = arith.constant 768 : index
    %65 = vector.load %arg6[%c0_32, %c768] : memref<1x1920xf32, #tpu.memory_space<vmem>>, vector<1x512xf32>
    %cst_33 = arith.constant 9.99999974E-6 : f32
    %66 = vector.broadcast %cst_33 : f32 to vector<1x512xf32>
    %67 = arith.addf %64, %66 : vector<1x512xf32>
    %68 = math.rsqrt %67 : vector<1x512xf32>
    %69 = arith.mulf %65, %68 : vector<1x512xf32>
    %70 = vector.broadcast %69 : vector<1x512xf32> to vector<2x512xf32>
    %71 = arith.mulf %59, %70 : vector<2x512xf32>
    %c0_34 = arith.constant 0 : index
    %c768_35 = arith.constant 768 : index
    %72 = vector.load %arg7[%c0_34, %c768_35] : memref<1x1920xf32, #tpu.memory_space<vmem>>, vector<1x512xf32>
    %73 = vector.broadcast %72 : vector<1x512xf32> to vector<2x512xf32>
    %74 = arith.addf %71, %73 : vector<2x512xf32>
    %75 = arith.truncf %74 : vector<2x512xf32> to vector<2x512xbf16>
    %c768_36 = arith.constant 768 : index
    %c0_37 = arith.constant 0 : index
    %76 = vector.load %arg8[%c768_36, %c0_37] : memref<2048x128xbf16, #tpu.memory_space<vmem>>, vector<512x128xbf16>
    %cst_38 = arith.constant dense<0.000000e+00> : vector<2x128xf32>
    %77 = tpu.matmul %75, %76, %cst_38 {dimension_numbers = #tpu.dot_dimension_numbers<[1], [0], [0], [1], [0, 0, 1, 1], [], []>} : vector<2x512xbf16>, vector<512x128xbf16>, vector<2x128xf32> -> vector<2x128xf32>
    %78 = arith.addf %52, %77 : vector<2x128xf32>
    %c0_39 = arith.constant 0 : index
    %c0_40 = arith.constant 0 : index
    %79 = vector.load %arg4[%c0_39, %c0_40] : memref<2x512xf32, #tpu.memory_space<vmem>>, vector<2x512xf32>
    %cst_41 = arith.constant dense<0.000000e+00> : vector<512xf32>
    %80 = vector.multi_reduction <add>, %79, %cst_41 [0] : vector<2x512xf32> to vector<512xf32>
    %81 = vector.shape_cast %80 : vector<512xf32> to vector<1x512xf32>
    %cst_42 = arith.constant 5.000000e-01 : f32
    %82 = vector.broadcast %cst_42 : f32 to vector<1x512xf32>
    %83 = arith.mulf %81, %82 : vector<1x512xf32>
    %84 = vector.broadcast %83 : vector<1x512xf32> to vector<2x512xf32>
    %85 = arith.subf %79, %84 : vector<2x512xf32>
    %86 = arith.mulf %85, %85 : vector<2x512xf32>
    %cst_43 = arith.constant dense<0.000000e+00> : vector<512xf32>
    %87 = vector.multi_reduction <add>, %86, %cst_43 [0] : vector<2x512xf32> to vector<512xf32>
    %88 = vector.shape_cast %87 : vector<512xf32> to vector<1x512xf32>
    %cst_44 = arith.constant 5.000000e-01 : f32
    %89 = vector.broadcast %cst_44 : f32 to vector<1x512xf32>
    %90 = arith.mulf %88, %89 : vector<1x512xf32>
    %c0_45 = arith.constant 0 : index
    %c1280 = arith.constant 1280 : index
    %91 = vector.load %arg6[%c0_45, %c1280] : memref<1x1920xf32, #tpu.memory_space<vmem>>, vector<1x512xf32>
    %cst_46 = arith.constant 9.99999974E-6 : f32
    %92 = vector.broadcast %cst_46 : f32 to vector<1x512xf32>
    %93 = arith.addf %90, %92 : vector<1x512xf32>
    %94 = math.rsqrt %93 : vector<1x512xf32>
    %95 = arith.mulf %91, %94 : vector<1x512xf32>
    %96 = vector.broadcast %95 : vector<1x512xf32> to vector<2x512xf32>
    %97 = arith.mulf %85, %96 : vector<2x512xf32>
    %c0_47 = arith.constant 0 : index
    %c1280_48 = arith.constant 1280 : index
    %98 = vector.load %arg7[%c0_47, %c1280_48] : memref<1x1920xf32, #tpu.memory_space<vmem>>, vector<1x512xf32>
    %99 = vector.broadcast %98 : vector<1x512xf32> to vector<2x512xf32>
    %100 = arith.addf %97, %99 : vector<2x512xf32>
    %101 = arith.truncf %100 : vector<2x512xf32> to vector<2x512xbf16>
    %c1280_49 = arith.constant 1280 : index
    %c0_50 = arith.constant 0 : index
    %102 = vector.load %arg8[%c1280_49, %c0_50] : memref<2048x128xbf16, #tpu.memory_space<vmem>>, vector<512x128xbf16>
    %cst_51 = arith.constant dense<0.000000e+00> : vector<2x128xf32>
    %103 = tpu.matmul %101, %102, %cst_51 {dimension_numbers = #tpu.dot_dimension_numbers<[1], [0], [0], [1], [0, 0, 1, 1], [], []>} : vector<2x512xbf16>, vector<512x128xbf16>, vector<2x128xf32> -> vector<2x128xf32>
    %104 = arith.addf %78, %103 : vector<2x128xf32>
    %c0_52 = arith.constant 0 : index
    %c0_53 = arith.constant 0 : index
    %105 = vector.load %arg5[%c0_52, %c0_53] : memref<2x128xf32, #tpu.memory_space<vmem>>, vector<2x128xf32>
    %cst_54 = arith.constant dense<0.000000e+00> : vector<128xf32>
    %106 = vector.multi_reduction <add>, %105, %cst_54 [0] : vector<2x128xf32> to vector<128xf32>
    %107 = vector.shape_cast %106 : vector<128xf32> to vector<1x128xf32>
    %cst_55 = arith.constant 5.000000e-01 : f32
    %108 = vector.broadcast %cst_55 : f32 to vector<1x128xf32>
    %109 = arith.mulf %107, %108 : vector<1x128xf32>
    %110 = vector.broadcast %109 : vector<1x128xf32> to vector<2x128xf32>
    %111 = arith.subf %105, %110 : vector<2x128xf32>
    %112 = arith.mulf %111, %111 : vector<2x128xf32>
    %cst_56 = arith.constant dense<0.000000e+00> : vector<128xf32>
    %113 = vector.multi_reduction <add>, %112, %cst_56 [0] : vector<2x128xf32> to vector<128xf32>
    %114 = vector.shape_cast %113 : vector<128xf32> to vector<1x128xf32>
    %cst_57 = arith.constant 5.000000e-01 : f32
    %115 = vector.broadcast %cst_57 : f32 to vector<1x128xf32>
    %116 = arith.mulf %114, %115 : vector<1x128xf32>
    %c0_58 = arith.constant 0 : index
    %c1792 = arith.constant 1792 : index
    %117 = vector.load %arg6[%c0_58, %c1792] : memref<1x1920xf32, #tpu.memory_space<vmem>>, vector<1x128xf32>
    %cst_59 = arith.constant 9.99999974E-6 : f32
    %118 = vector.broadcast %cst_59 : f32 to vector<1x128xf32>
    %119 = arith.addf %116, %118 : vector<1x128xf32>
    %120 = math.rsqrt %119 : vector<1x128xf32>
    %121 = arith.mulf %117, %120 : vector<1x128xf32>
    %122 = vector.broadcast %121 : vector<1x128xf32> to vector<2x128xf32>
    %123 = arith.mulf %111, %122 : vector<2x128xf32>
    %c0_60 = arith.constant 0 : index
    %c1792_61 = arith.constant 1792 : index
    %124 = vector.load %arg7[%c0_60, %c1792_61] : memref<1x1920xf32, #tpu.memory_space<vmem>>, vector<1x128xf32>
    %125 = vector.broadcast %124 : vector<1x128xf32> to vector<2x128xf32>
    %126 = arith.addf %123, %125 : vector<2x128xf32>
    %127 = arith.truncf %126 : vector<2x128xf32> to vector<2x128xbf16>
    %c1792_62 = arith.constant 1792 : index
    %c0_63 = arith.constant 0 : index
    %128 = vector.load %arg8[%c1792_62, %c0_63] : memref<2048x128xbf16, #tpu.memory_space<vmem>>, vector<128x128xbf16>
    %cst_64 = arith.constant dense<0.000000e+00> : vector<2x128xf32>
    %129 = tpu.matmul %127, %128, %cst_64 {dimension_numbers = #tpu.dot_dimension_numbers<[1], [0], [0], [1], [0, 0, 1, 1], [], []>} : vector<2x128xbf16>, vector<128x128xbf16>, vector<2x128xf32> -> vector<2x128xf32>
    %130 = arith.addf %104, %129 : vector<2x128xf32>
    %c0_65 = arith.constant 0 : index
    %c0_66 = arith.constant 0 : index
    %131 = vector.load %arg5[%c0_65, %c0_66] : memref<2x128xf32, #tpu.memory_space<vmem>>, vector<2x128xf32>
    %132 = arith.truncf %131 : vector<2x128xf32> to vector<2x128xbf16>
    %c1920 = arith.constant 1920 : index
    %c0_67 = arith.constant 0 : index
    %133 = vector.load %arg8[%c1920, %c0_67] : memref<2048x128xbf16, #tpu.memory_space<vmem>>, vector<128x128xbf16>
    %cst_68 = arith.constant dense<0.000000e+00> : vector<2x128xf32>
    %134 = tpu.matmul %132, %133, %cst_68 {dimension_numbers = #tpu.dot_dimension_numbers<[1], [0], [0], [1], [0, 0, 1, 1], [], []>} : vector<2x128xbf16>, vector<128x128xbf16>, vector<2x128xf32> -> vector<2x128xf32>
    %135 = arith.addf %130, %134 : vector<2x128xf32>
    %c0_69 = arith.constant 0 : index
    %c0_70 = arith.constant 0 : index
    %136 = vector.load %arg9[%c0_69, %c0_70] : memref<1x128xf32, #tpu.memory_space<vmem>>, vector<1x128xf32>
    %137 = vector.broadcast %136 : vector<1x128xf32> to vector<2x128xf32>
    %138 = arith.addf %135, %137 : vector<2x128xf32>
    %cst_71 = arith.constant 0.166666672 : f32
    %139 = vector.broadcast %cst_71 : f32 to vector<2x128xf32>
    %140 = arith.mulf %138, %139 : vector<2x128xf32>
    %c0_72 = arith.constant 0 : index
    %c0_73 = arith.constant 0 : index
    %141 = vector.load %arg10[%c0_72, %c0_73] : memref<2x128xf32, #tpu.memory_space<vmem>>, vector<2x128xf32>
    tpu.vector_store %arg10[%c0_72, %c0_73], %140 {strides = array<i32>} : memref<2x128xf32, #tpu.memory_space<vmem>>, vector<2x128xf32>,
    return
  }
  func.func @transform_0(%arg0: i32) -> (i32, i32) {
    %c0_i32 = arith.constant 0 : i32
    %c0_i32_0 = arith.constant 0 : i32
    %c0_i32_1 = arith.constant 0 : i32
    return %c0_i32, %c0_i32_0 : i32, i32
  }
  func.func @transform_1(%arg0: i32) -> (i32, i32) {
    %c0_i32 = arith.constant 0 : i32
    %c0_i32_0 = arith.constant 0 : i32
    %c0_i32_1 = arith.constant 0 : i32
    return %c0_i32, %c0_i32_0 : i32, i32
  }
  func.func @transform_2(%arg0: i32) -> (i32, i32) {
    %c0_i32 = arith.constant 0 : i32
    %c0_i32_0 = arith.constant 0 : i32
    %c0_i32_1 = arith.constant 0 : i32
    return %c0_i32, %c0_i32_0 : i32, i32
  }
  func.func @transform_3(%arg0: i32) -> (i32, i32) {
    %c0_i32 = arith.constant 0 : i32
    %c0_i32_0 = arith.constant 0 : i32
    %c0_i32_1 = arith.constant 0 : i32
    return %c0_i32, %c0_i32_0 : i32, i32
  }
  func.func @transform_4(%arg0: i32) -> (i32, i32) {
    %c0_i32 = arith.constant 0 : i32
    %c0_i32_0 = arith.constant 0 : i32
    %c0_i32_1 = arith.constant 0 : i32
    return %c0_i32, %c0_i32_0 : i32, i32
  }
  func.func @transform_5(%arg0: i32) -> (i32, i32) {
    %c0_i32 = arith.constant 0 : i32
    %c0_i32_0 = arith.constant 0 : i32
    %c0_i32_1 = arith.constant 0 : i32
    return %c0_i32, %c0_i32_0 : i32, i32
  }
  func.func @transform_6(%arg0: i32) -> (i32, i32) {
    %c0_i32 = arith.constant 0 : i32
    %c0_i32_0 = arith.constant 0 : i32
    %c0_i32_1 = arith.constant 0 : i32
    return %c0_i32, %c0_i32_0 : i32, i32
  }
  func.func @transform_7(%arg0: i32) -> (i32, i32) {
    %c0_i32 = arith.constant 0 : i32
    %c0_i32_0 = arith.constant 0 : i32
    %c0_i32_1 = arith.constant 0 : i32
    return %c0_i32, %c0_i32_0 : i32, i32
  }
  func.func @transform_8(%arg0: i32) -> (i32, i32) {
    %c0_i32 = arith.constant 0 : i32
    %c0_i32_0 = arith.constant 0 : i32
    %c0_i32_1 = arith.constant 0 : i32
    return %c0_i32, %c0_i32_0 : i32, i32
  }
  func.func @transform_9(%arg0: i32) -> (i32, i32) {
    %c0_i32 = arith.constant 0 : i32
    %c0_i32_0 = arith.constant 0 : i32
    %c0_i32_1 = arith.constant 0 : i32
    return %c0_i32, %c0_i32_0 : i32, i32
  }
}

</mosaic_0001>

<llo_original>
// kernel: reverse
$region0: #{reverse}
  #allocation0 [shape = 's32[1]{0}', space=sflag, size = 0x4, scoped, tag = 'scoped memory for reverse']
  %s0 = inlined_call_operand.vmem [shape: f32[128,64,3,3], index: 0, kind: input, shape index: {}]
  %s1 = inlined_call_operand.vmem [shape: bf16[128,64,3,3], index: 1, kind: output, shape index: {}]
  %s2 = scalar_lea.vmem %s0, 512
  %v3 = vld [vmem:[%s2] sm:$0xff]
  %v4 = vpack.c.bf16 0.0, %v3
  %5 = vst [vmem:[%s1] sm:$0xf] %v4
  %s6 = scalar_lea.vmem %s0, 320
  %v7 = vld [vmem:[%s6] sm:$0xff]
  %s8 = scalar_lea.vmem %s1, 96
  %v9 = vpack.c.bf16 0.0, %v7
  %10 = vst [vmem:[%s8] sm:$0xf] %v9
  %s11 = scalar_lea.vmem %s0, 128
  %v12 = vld [vmem:[%s11] sm:$0xff]
  %s13 = scalar_lea.vmem %s1, 192
  %v14 = vpack.c.bf16 0.0, %v12
  %15 = vst [vmem:[%s13] sm:$0xf] %v14
  %s16 = scalar_lea.vmem %s0, 448
  %v17 = vld [vmem:[%s16] sm:$0xff]
  %s18 = scalar_lea.vmem %s1, 32
  %v19 = vpack.c.bf16 0.0, %v17
  %20 = vst [vmem:[%s18] sm:$0xf] %v19
  %s21 = scalar_lea.vmem %s0, 256
  %v22 = vld [vmem:[%s21] sm:$0xff]
  %s23 = scalar_lea.vmem %s1, 128
  %v24 = vpack.c.bf16 0.0, %v22
  %25 = vst [vmem:[%s23] sm:$0xf] %v24
  %s26 = scalar_lea.vmem %s0, 64
  %v27 = vld [vmem:[%s26] sm:$0xff]
  %s28 = scalar_lea.vmem %s1, 224
  %v29 = vpack.c.bf16 0.0, %v27
  %30 = vst [vmem:[%s28] sm:$0xf] %v29
  %s31 = scalar_lea.vmem %s0, 384
  %v32 = vld [vmem:[%s31] sm:$0xff]
  %s33 = scalar_lea.vmem %s1, 64
  %v34 = vpack.c.bf16 0.0, %v32
  %35 = vst [vmem:[%s33] sm:$0xf] %v34
  %s36 = scalar_lea.vmem %s0, 192
  %v37 = vld [vmem:[%s36] sm:$0xff]
  %s38 = scalar_lea.vmem %s1, 160
  %v39 = vpack.c.bf16 0.0, %v37
  %40 = vst [vmem:[%s38] sm:$0xf] %v39
  %v41 = vld [vmem:[%s0] sm:$0xff]
  %s42 = scalar_lea.vmem %s1, 256
  %v43 = vpack.c.bf16 0.0, %v41
  %44 = vst [vmem:[%s42] sm:$0xf] %v43
  %s45 = scalar_lea.vmem %s0, 520
  %v46 = vld [vmem:[%s45] sm:$0xff]
  %s47 = scalar_lea.vmem %s1, 4
  %v48 = vpack.c.bf16 0.0, %v46
  %49 = vst [vmem:[%s47] sm:$0xf] %v48
  %s50 = scalar_lea.vmem %s0, 328
  %v51 = vld [vmem:[%s50] sm:$0xff]
  %s52 = scalar_lea.vmem %s1, 100
  %v53 = vpack.c.bf16 0.0, %v51
  %54 = vst [vmem:[%s52] sm:$0xf] %v53
  %s55 = scalar_lea.vmem %s0, 136
  %v56 = vld [vmem:[%s55] sm:$0xff]
  %s57 = scalar_lea.vmem %s1, 196
  %v58 = vpack.c.bf16 0.0, %v56
  %59 = vst [vmem:[%s57] sm:$0xf] %v58
  %s60 = scalar_lea.vmem %s0, 456
  %v61 = vld [vmem:[%s60] sm:$0xff]
  %s62 = scalar_lea.vmem %s1, 36
  %v63 = vpack.c.bf16 0.0, %v61
  %64 = vst [vmem:[%s62] sm:$0xf] %v63
  %s65 = scalar_lea.vmem %s0, 264
  %v66 = vld [vmem:[%s65] sm:$0xff]
  %s67 = scalar_lea.vmem %s1, 132
  %v68 = vpack.c.bf16 0.0, %v66
  %69 = vst [vmem:[%s67] sm:$0xf] %v68
  %s70 = scalar_lea.vmem %s0, 72
  %v71 = vld [vmem:[%s70] sm:$0xff]
  %s72 = scalar_lea.vmem %s1, 228
  %v73 = vpack.c.bf16 0.0, %v71
  %74 = vst [vmem:[%s72] sm:$0xf] %v73
  %s75 = scalar_lea.vmem %s0, 392
  %v76 = vld [vmem:[%s75] sm:$0xff]
  %s77 = scalar_lea.vmem %s1, 68
  %v78 = vpack.c.bf16 0.0, %v76
  %79 = vst [vmem:[%s77] sm:$0xf] %v78
  %s80 = scalar_lea.vmem %s0, 200
  %v81 = vld [vmem:[%s80] sm:$0xff]
  %s82 = scalar_lea.vmem %s1, 164
  %v83 = vpack.c.bf16 0.0, %v81
  %84 = vst [vmem:[%s82] sm:$0xf] %v83
  %s85 = scalar_lea.vmem %s0, 8
  %v86 = vld [vmem:[%s85] sm:$0xff]
  %s87 = scalar_lea.vmem %s1, 260
  %v88 = vpack.c.bf16 0.0, %v86
  %89 = vst [vmem:[%s87] sm:$0xf] %v88
  %s90 = scalar_lea.vmem %s0, 528
  %v91 = vld [vmem:[%s90] sm:$0xff]
  %s92 = scalar_lea.vmem %s1, 8
  %v93 = vpack.c.bf16 0.0, %v91
  %94 = vst [vmem:[%s92] sm:$0xf] %v93
  %s95 = scalar_lea.vmem %s0, 336
  %v96 = vld [vmem:[%s95] sm:$0xff]
  %s97 = scalar_lea.vmem %s1, 104
  %v98 = vpack.c.bf16 0.0, %v96
  %99 = vst [vmem:[%s97] sm:$0xf] %v98
  %s100 = scalar_lea.vmem %s0, 144
  %v101 = vld [vmem:[%s100] sm:$0xff]
  %s102 = scalar_lea.vmem %s1, 200
  %v103 = vpack.c.bf16 0.0, %v101
  %104 = vst [vmem:[%s102] sm:$0xf] %v103
  %s105 = scalar_lea.vmem %s0, 464
  %v106 = vld [vmem:[%s105] sm:$0xff]
  %s107 = scalar_lea.vmem %s1, 40
  %v108 = vpack.c.bf16 0.0, %v106
  %109 = vst [vmem:[%s107] sm:$0xf] %v108
  %s110 = scalar_lea.vmem %s0, 272
  %v111 = vld [vmem:[%s110] sm:$0xff]
  %s112 = scalar_lea.vmem %s1, 136
  %v113 = vpack.c.bf16 0.0, %v111
  %114 = vst [vmem:[%s112] sm:$0xf] %v113
  %s115 = scalar_lea.vmem %s0, 80
  %v116 = vld [vmem:[%s115] sm:$0xff]
  %s117 = scalar_lea.vmem %s1, 232
  %v118 = vpack.c.bf16 0.0, %v116
  %119 = vst [vmem:[%s117] sm:$0xf] %v118
  %s120 = scalar_lea.vmem %s0, 400
  %v121 = vld [vmem:[%s120] sm:$0xff]
  %s122 = scalar_lea.vmem %s1, 72
  %v123 = vpack.c.bf16 0.0, %v121
  %124 = vst [vmem:[%s122] sm:$0xf] %v123
  %s125 = scalar_lea.vmem %s0, 208
  %v126 = vld [vmem:[%s125] sm:$0xff]
  %s127 = scalar_lea.vmem %s1, 168
  %v128 = vpack.c.bf16 0.0, %v126
  %129 = vst [vmem:[%s127] sm:$0xf] %v128
  %s130 = scalar_lea.vmem %s0, 16
  %v131 = vld [vmem:[%s130] sm:$0xff]
  %s132 = scalar_lea.vmem %s1, 264
  %v133 = vpack.c.bf16 0.0, %v131
  %134 = vst [vmem:[%s132] sm:$0xf] %v133
  %s135 = scalar_lea.vmem %s0, 536
  %v136 = vld [vmem:[%s135] sm:$0xff]
  %s137 = scalar_lea.vmem %s1, 12
  %v138 = vpack.c.bf16 0.0, %v136
  %139 = vst [vmem:[%s137] sm:$0xf] %v138
  %s140 = scalar_lea.vmem %s0, 344
  %v141 = vld [vmem:[%s140] sm:$0xff]
  %s142 = scalar_lea.vmem %s1, 108
  %v143 = vpack.c.bf16 0.0, %v141
  %144 = vst [vmem:[%s142] sm:$0xf] %v143
  %s145 = scalar_lea.vmem %s0, 152
  %v146 = vld [vmem:[%s145] sm:$0xff]
  %s147 = scalar_lea.vmem %s1, 204
  %v148 = vpack.c.bf16 0.0, %v146
  %149 = vst [vmem:[%s147] sm:$0xf] %v148
  %s150 = scalar_lea.vmem %s0, 472
  %v151 = vld [vmem:[%s150] sm:$0xff]
  %s152 = scalar_lea.vmem %s1, 44
  %v153 = vpack.c.bf16 0.0, %v151
  %154 = vst [vmem:[%s152] sm:$0xf] %v153
  %s155 = scalar_lea.vmem %s0, 280
  %v156 = vld [vmem:[%s155] sm:$0xff]
  %s157 = scalar_lea.vmem %s1, 140
  %v158 = vpack.c.bf16 0.0, %v156
  %159 = vst [vmem:[%s157] sm:$0xf] %v158
  %s160 = scalar_lea.vmem %s0, 88
  %v161 = vld [vmem:[%s160] sm:$0xff]
  %s162 = scalar_lea.vmem %s1, 236
  %v163 = vpack.c.bf16 0.0, %v161
  %164 = vst [vmem:[%s162] sm:$0xf] %v163
  %s165 = scalar_lea.vmem %s0, 408
  %v166 = vld [vmem:[%s165] sm:$0xff]
  %s167 = scalar_lea.vmem %s1, 76
  %v168 = vpack.c.bf16 0.0, %v166
  %169 = vst [vmem:[%s167] sm:$0xf] %v168
  %s170 = scalar_lea.vmem %s0, 216
  %v171 = vld [vmem:[%s170] sm:$0xff]
  %s172 = scalar_lea.vmem %s1, 172
  %v173 = vpack.c.bf16 0.0, %v171
  %174 = vst [vmem:[%s172] sm:$0xf] %v173
  %s175 = scalar_lea.vmem %s0, 24
  %v176 = vld [vmem:[%s175] sm:$0xff]
  %s177 = scalar_lea.vmem %s1, 268
  %v178 = vpack.c.bf16 0.0, %v176
  %179 = vst [vmem:[%s177] sm:$0xf] %v178
  %s180 = scalar_lea.vmem %s0, 544
  %v181 = vld [vmem:[%s180] sm:$0xff]
  %s182 = scalar_lea.vmem %s1, 16
  %v183 = vpack.c.bf16 0.0, %v181
  %184 = vst [vmem:[%s182] sm:$0xf] %v183
  %s185 = scalar_lea.vmem %s0, 352
  %v186 = vld [vmem:[%s185] sm:$0xff]
  %s187 = scalar_lea.vmem %s1, 112
  %v188 = vpack.c.bf16 0.0, %v186
  %189 = vst [vmem:[%s187] sm:$0xf] %v188
  %s190 = scalar_lea.vmem %s0, 160
  %v191 = vld [vmem:[%s190] sm:$0xff]
  %s192 = scalar_lea.vmem %s1, 208
  %v193 = vpack.c.bf16 0.0, %v191
  %194 = vst [vmem:[%s192] sm:$0xf] %v193
  %s195 = scalar_lea.vmem %s0, 480
  %v196 = vld [vmem:[%s195] sm:$0xff]
  %s197 = scalar_lea.vmem %s1, 48
  %v198 = vpack.c.bf16 0.0, %v196
  %199 = vst [vmem:[%s197] sm:$0xf] %v198
  %s200 = scalar_lea.vmem %s0, 288
  %v201 = vld [vmem:[%s200] sm:$0xff]
  %s202 = scalar_lea.vmem %s1, 144
  %v203 = vpack.c.bf16 0.0, %v201
  %204 = vst [vmem:[%s202] sm:$0xf] %v203
  %s205 = scalar_lea.vmem %s0, 96
  %v206 = vld [vmem:[%s205] sm:$0xff]
  %s207 = scalar_lea.vmem %s1, 240
  %v208 = vpack.c.bf16 0.0, %v206
  %209 = vst [vmem:[%s207] sm:$0xf] %v208
  %s210 = scalar_lea.vmem %s0, 416
  %v211 = vld [vmem:[%s210] sm:$0xff]
  %s212 = scalar_lea.vmem %s1, 80
  %v213 = vpack.c.bf16 0.0, %v211
  %214 = vst [vmem:[%s212] sm:$0xf] %v213
  %s215 = scalar_lea.vmem %s0, 224
  %v216 = vld [vmem:[%s215] sm:$0xff]
  %s217 = scalar_lea.vmem %s1, 176
  %v218 = vpack.c.bf16 0.0, %v216
  %219 = vst [vmem:[%s217] sm:$0xf] %v218
  %s220 = scalar_lea.vmem %s0, 32
  %v221 = vld [vmem:[%s220] sm:$0xff]
  %s222 = scalar_lea.vmem %s1, 272
  %v223 = vpack.c.bf16 0.0, %v221
  %224 = vst [vmem:[%s222] sm:$0xf] %v223
  %s225 = scalar_lea.vmem %s0, 552
  %v226 = vld [vmem:[%s225] sm:$0xff]
  %s227 = scalar_lea.vmem %s1, 20
  %v228 = vpack.c.bf16 0.0, %v226
  %229 = vst [vmem:[%s227] sm:$0xf] %v228
  %s230 = scalar_lea.vmem %s0, 360
  %v231 = vld [vmem:[%s230] sm:$0xff]
  %s232 = scalar_lea.vmem %s1, 116
  %v233 = vpack.c.bf16 0.0, %v231
  %234 = vst [vmem:[%s232] sm:$0xf] %v233
  %s235 = scalar_lea.vmem %s0, 168
  %v236 = vld [vmem:[%s235] sm:$0xff]
  %s237 = scalar_lea.vmem %s1, 212
  %v238 = vpack.c.bf16 0.0, %v236
  %239 = vst [vmem:[%s237] sm:$0xf] %v238
  %s240 = scalar_lea.vmem %s0, 488
  %v241 = vld [vmem:[%s240] sm:$0xff]
  %s242 = scalar_lea.vmem %s1, 52
  %v243 = vpack.c.bf16 0.0, %v241
  %244 = vst [vmem:[%s242] sm:$0xf] %v243
  %s245 = scalar_lea.vmem %s0, 296
  %v246 = vld [vmem:[%s245] sm:$0xff]
  %s247 = scalar_lea.vmem %s1, 148
  %v248 = vpack.c.bf16 0.0, %v246
  %249 = vst [vmem:[%s247] sm:$0xf] %v248
  %s250 = scalar_lea.vmem %s0, 104
  %v251 = vld [vmem:[%s250] sm:$0xff]
  %s252 = scalar_lea.vmem %s1, 244
  %v253 = vpack.c.bf16 0.0, %v251
  %254 = vst [vmem:[%s252] sm:$0xf] %v253
  %s255 = scalar_lea.vmem %s0, 424
  %v256 = vld [vmem:[%s255] sm:$0xff]
  %s257 = scalar_lea.vmem %s1, 84
  %v258 = vpack.c.bf16 0.0, %v256
  %259 = vst [vmem:[%s257] sm:$0xf] %v258
  %s260 = scalar_lea.vmem %s0, 232
  %v261 = vld [vmem:[%s260] sm:$0xff]
  %s262 = scalar_lea.vmem %s1, 180
  %v263 = vpack.c.bf16 0.0, %v261
  %264 = vst [vmem:[%s262] sm:$0xf] %v263
  %s265 = scalar_lea.vmem %s0, 40
  %v266 = vld [vmem:[%s265] sm:$0xff]
  %s267 = scalar_lea.vmem %s1, 276
  %v268 = vpack.c.bf16 0.0, %v266
  %269 = vst [vmem:[%s267] sm:$0xf] %v268
  %s270 = scalar_lea.vmem %s0, 560
  %v271 = vld [vmem:[%s270] sm:$0xff]
  %s272 = scalar_lea.vmem %s1, 24
  %v273 = vpack.c.bf16 0.0, %v271
  %274 = vst [vmem:[%s272] sm:$0xf] %v273
  %s275 = scalar_lea.vmem %s0, 368
  %v276 = vld [vmem:[%s275] sm:$0xff]
  %s277 = scalar_lea.vmem %s1, 120
  %v278 = vpack.c.bf16 0.0, %v276
  %279 = vst [vmem:[%s277] sm:$0xf] %v278
  %s280 = scalar_lea.vmem %s0, 176
  %v281 = vld [vmem:[%s280] sm:$0xff]
  %s282 = scalar_lea.vmem %s1, 216
  %v283 = vpack.c.bf16 0.0, %v281
  %284 = vst [vmem:[%s282] sm:$0xf] %v283
  %s285 = scalar_lea.vmem %s0, 496
  %v286 = vld [vmem:[%s285] sm:$0xff]
  %s287 = scalar_lea.vmem %s1, 56
  %v288 = vpack.c.bf16 0.0, %v286
  %289 = vst [vmem:[%s287] sm:$0xf] %v288
  %s290 = scalar_lea.vmem %s0, 304
  %v291 = vld [vmem:[%s290] sm:$0xff]
  %s292 = scalar_lea.vmem %s1, 152
  %v293 = vpack.c.bf16 0.0, %v291
  %294 = vst [vmem:[%s292] sm:$0xf] %v293
  %s295 = scalar_lea.vmem %s0, 112
  %v296 = vld [vmem:[%s295] sm:$0xff]
  %s297 = scalar_lea.vmem %s1, 248
  %v298 = vpack.c.bf16 0.0, %v296
  %299 = vst [vmem:[%s297] sm:$0xf] %v298
  %s300 = scalar_lea.vmem %s0, 432
  %v301 = vld [vmem:[%s300] sm:$0xff]
  %s302 = scalar_lea.vmem %s1, 88
  %v303 = vpack.c.bf16 0.0, %v301
  %304 = vst [vmem:[%s302] sm:$0xf] %v303
  %s305 = scalar_lea.vmem %s0, 240
  %v306 = vld [vmem:[%s305] sm:$0xff]
  %s307 = scalar_lea.vmem %s1, 184
  %v308 = vpack.c.bf16 0.0, %v306
  %309 = vst [vmem:[%s307] sm:$0xf] %v308
  %s310 = scalar_lea.vmem %s0, 48
  %v311 = vld [vmem:[%s310] sm:$0xff]
  %s312 = scalar_lea.vmem %s1, 280
  %v313 = vpack.c.bf16 0.0, %v311
  %314 = vst [vmem:[%s312] sm:$0xf] %v313
  %s315 = scalar_lea.vmem %s0, 568
  %v316 = vld [vmem:[%s315] sm:$0xff]
  %s317 = scalar_lea.vmem %s1, 28
  %v318 = vpack.c.bf16 0.0, %v316
  %319 = vst [vmem:[%s317] sm:$0xf] %v318
  %s320 = scalar_lea.vmem %s0, 376
  %v321 = vld [vmem:[%s320] sm:$0xff]
  %s322 = scalar_lea.vmem %s1, 124
  %v323 = vpack.c.bf16 0.0, %v321
  %324 = vst [vmem:[%s322] sm:$0xf] %v323
  %s325 = scalar_lea.vmem %s0, 184
  %v326 = vld [vmem:[%s325] sm:$0xff]
  %s327 = scalar_lea.vmem %s1, 220
  %v328 = vpack.c.bf16 0.0, %v326
  %329 = vst [vmem:[%s327] sm:$0xf] %v328
  %s330 = scalar_lea.vmem %s0, 504
  %v331 = vld [vmem:[%s330] sm:$0xff]
  %s332 = scalar_lea.vmem %s1, 60
  %v333 = vpack.c.bf16 0.0, %v331
  %334 = vst [vmem:[%s332] sm:$0xf] %v333
  %s335 = scalar_lea.vmem %s0, 312
  %v336 = vld [vmem:[%s335] sm:$0xff]
  %s337 = scalar_lea.vmem %s1, 156
  %v338 = vpack.c.bf16 0.0, %v336
  %339 = vst [vmem:[%s337] sm:$0xf] %v338
  %s340 = scalar_lea.vmem %s0, 120
  %v341 = vld [vmem:[%s340] sm:$0xff]
  %s342 = scalar_lea.vmem %s1, 252
  %v343 = vpack.c.bf16 0.0, %v341
  %344 = vst [vmem:[%s342] sm:$0xf] %v343
  %s345 = scalar_lea.vmem %s0, 440
  %v346 = vld [vmem:[%s345] sm:$0xff]
  %s347 = scalar_lea.vmem %s1, 92
  %v348 = vpack.c.bf16 0.0, %v346
  %349 = vst [vmem:[%s347] sm:$0xf] %v348
  %s350 = scalar_lea.vmem %s0, 248
  %v351 = vld [vmem:[%s350] sm:$0xff]
  %s352 = scalar_lea.vmem %s1, 188
  %v353 = vpack.c.bf16 0.0, %v351
  %354 = vst [vmem:[%s352] sm:$0xf] %v353
  %s355 = scalar_lea.vmem %s0, 56
  %v356 = vld [vmem:[%s355] sm:$0xff]
  %s357 = scalar_lea.vmem %s1, 284
  %v358 = vpack.c.bf16 0.0, %v356
  %359 = vst [vmem:[%s357] sm:$0xf] %v358

// kernel: reverse.1
$region0: #{reverse.1}
  #allocation0 [shape = 's32[1]{0}', space=sflag, size = 0x4, scoped, tag = 'scoped memory for reverse.1']
  %s0 = inlined_call_operand.vmem [shape: f32[128,128,3,3], index: 0, kind: input, shape index: {}]
  %s1 = inlined_call_operand.vmem [shape: bf16[128,128,3,3], index: 1, kind: output, shape index: {}]
  %s2 = scalar_lea.vmem %s0, 1024
  %v3 = vld [vmem:[%s2] sm:$0xff]
  %v4 = vpack.c.bf16 0.0, %v3
  %5 = vst [vmem:[%s1] sm:$0xf] %v4
  %s6 = scalar_lea.vmem %s0, 640
  %v7 = vld [vmem:[%s6] sm:$0xff]
  %s8 = scalar_lea.vmem %s1, 192
  %v9 = vpack.c.bf16 0.0, %v7
  %10 = vst [vmem:[%s8] sm:$0xf] %v9
  %s11 = scalar_lea.vmem %s0, 256
  %v12 = vld [vmem:[%s11] sm:$0xff]
  %s13 = scalar_lea.vmem %s1, 384
  %v14 = vpack.c.bf16 0.0, %v12
  %15 = vst [vmem:[%s13] sm:$0xf] %v14
  %s16 = scalar_lea.vmem %s0, 896
  %v17 = vld [vmem:[%s16] sm:$0xff]
  %s18 = scalar_lea.vmem %s1, 64
  %v19 = vpack.c.bf16 0.0, %v17
  %20 = vst [vmem:[%s18] sm:$0xf] %v19
  %s21 = scalar_lea.vmem %s0, 512
  %v22 = vld [vmem:[%s21] sm:$0xff]
  %s23 = scalar_lea.vmem %s1, 256
  %v24 = vpack.c.bf16 0.0, %v22
  %25 = vst [vmem:[%s23] sm:$0xf] %v24
  %s26 = scalar_lea.vmem %s0, 128
  %v27 = vld [vmem:[%s26] sm:$0xff]
  %s28 = scalar_lea.vmem %s1, 448
  %v29 = vpack.c.bf16 0.0, %v27
  %30 = vst [vmem:[%s28] sm:$0xf] %v29
  %s31 = scalar_lea.vmem %s0, 768
  %v32 = vld [vmem:[%s31] sm:$0xff]
  %s33 = scalar_lea.vmem %s1, 128
  %v34 = vpack.c.bf16 0.0, %v32
  %35 = vst [vmem:[%s33] sm:$0xf] %v34
  %s36 = scalar_lea.vmem %s0, 384
  %v37 = vld [vmem:[%s36] sm:$0xff]
  %s38 = scalar_lea.vmem %s1, 320
  %v39 = vpack.c.bf16 0.0, %v37
  %40 = vst [vmem:[%s38] sm:$0xf] %v39
  %v41 = vld [vmem:[%s0] sm:$0xff]
  %s42 = scalar_lea.vmem %s1, 512
  %v43 = vpack.c.bf16 0.0, %v41
  %44 = vst [vmem:[%s42] sm:$0xf] %v43
  %s45 = scalar_lea.vmem %s0, 1032
  %v46 = vld [vmem:[%s45] sm:$0xff]
  %s47 = scalar_lea.vmem %s1, 4
  %v48 = vpack.c.bf16 0.0, %v46
  %49 = vst [vmem:[%s47] sm:$0xf] %v48
  %s50 = scalar_lea.vmem %s0, 648
  %v51 = vld [vmem:[%s50] sm:$0xff]
  %s52 = scalar_lea.vmem %s1, 196
  %v53 = vpack.c.bf16 0.0, %v51
  %54 = vst [vmem:[%s52] sm:$0xf] %v53
  %s55 = scalar_lea.vmem %s0, 264
  %v56 = vld [vmem:[%s55] sm:$0xff]
  %s57 = scalar_lea.vmem %s1, 388
  %v58 = vpack.c.bf16 0.0, %v56
  %59 = vst [vmem:[%s57] sm:$0xf] %v58
  %s60 = scalar_lea.vmem %s0, 904
  %v61 = vld [vmem:[%s60] sm:$0xff]
  %s62 = scalar_lea.vmem %s1, 68
  %v63 = vpack.c.bf16 0.0, %v61
  %64 = vst [vmem:[%s62] sm:$0xf] %v63
  %s65 = scalar_lea.vmem %s0, 520
  %v66 = vld [vmem:[%s65] sm:$0xff]
  %s67 = scalar_lea.vmem %s1, 260
  %v68 = vpack.c.bf16 0.0, %v66
  %69 = vst [vmem:[%s67] sm:$0xf] %v68
  %s70 = scalar_lea.vmem %s0, 136
  %v71 = vld [vmem:[%s70] sm:$0xff]
  %s72 = scalar_lea.vmem %s1, 452
  %v73 = vpack.c.bf16 0.0, %v71
  %74 = vst [vmem:[%s72] sm:$0xf] %v73
  %s75 = scalar_lea.vmem %s0, 776
  %v76 = vld [vmem:[%s75] sm:$0xff]
  %s77 = scalar_lea.vmem %s1, 132
  %v78 = vpack.c.bf16 0.0, %v76
  %79 = vst [vmem:[%s77] sm:$0xf] %v78
  %s80 = scalar_lea.vmem %s0, 392
  %v81 = vld [vmem:[%s80] sm:$0xff]
  %s82 = scalar_lea.vmem %s1, 324
  %v83 = vpack.c.bf16 0.0, %v81
  %84 = vst [vmem:[%s82] sm:$0xf] %v83
  %s85 = scalar_lea.vmem %s0, 8
  %v86 = vld [vmem:[%s85] sm:$0xff]
  %s87 = scalar_lea.vmem %s1, 516
  %v88 = vpack.c.bf16 0.0, %v86
  %89 = vst [vmem:[%s87] sm:$0xf] %v88
  %s90 = scalar_lea.vmem %s0, 1040
  %v91 = vld [vmem:[%s90] sm:$0xff]
  %s92 = scalar_lea.vmem %s1, 8
  %v93 = vpack.c.bf16 0.0, %v91
  %94 = vst [vmem:[%s92] sm:$0xf] %v93
  %s95 = scalar_lea.vmem %s0, 656
  %v96 = vld [vmem:[%s95] sm:$0xff]
  %s97 = scalar_lea.vmem %s1, 200
  %v98 = vpack.c.bf16 0.0, %v96
  %99 = vst [vmem:[%s97] sm:$0xf] %v98
  %s100 = scalar_lea.vmem %s0, 272
  %v101 = vld [vmem:[%s100] sm:$0xff]
  %s102 = scalar_lea.vmem %s1, 392
  %v103 = vpack.c.bf16 0.0, %v101
  %104 = vst [vmem:[%s102] sm:$0xf] %v103
  %s105 = scalar_lea.vmem %s0, 912
  %v106 = vld [vmem:[%s105] sm:$0xff]
  %s107 = scalar_lea.vmem %s1, 72
  %v108 = vpack.c.bf16 0.0, %v106
  %109 = vst [vmem:[%s107] sm:$0xf] %v108
  %s110 = scalar_lea.vmem %s0, 528
  %v111 = vld [vmem:[%s110] sm:$0xff]
  %s112 = scalar_lea.vmem %s1, 264
  %v113 = vpack.c.bf16 0.0, %v111
  %114 = vst [vmem:[%s112] sm:$0xf] %v113
  %s115 = scalar_lea.vmem %s0, 144
  %v116 = vld [vmem:[%s115] sm:$0xff]
  %s117 = scalar_lea.vmem %s1, 456
  %v118 = vpack.c.bf16 0.0, %v116
  %119 = vst [vmem:[%s117] sm:$0xf] %v118
  %s120 = scalar_lea.vmem %s0, 784
  %v121 = vld [vmem:[%s120] sm:$0xff]
  %s122 = scalar_lea.vmem %s1, 136
  %v123 = vpack.c.bf16 0.0, %v121
  %124 = vst [vmem:[%s122] sm:$0xf] %v123
  %s125 = scalar_lea.vmem %s0, 400
  %v126 = vld [vmem:[%s125] sm:$0xff]
  %s127 = scalar_lea.vmem %s1, 328
  %v128 = vpack.c.bf16 0.0, %v126
  %129 = vst [vmem:[%s127] sm:$0xf] %v128
  %s130 = scalar_lea.vmem %s0, 16
  %v131 = vld [vmem:[%s130] sm:$0xff]
  %s132 = scalar_lea.vmem %s1, 520
  %v133 = vpack.c.bf16 0.0, %v131
  %134 = vst [vmem:[%s132] sm:$0xf] %v133
  %s135 = scalar_lea.vmem %s0, 1048
  %v136 = vld [vmem:[%s135] sm:$0xff]
  %s137 = scalar_lea.vmem %s1, 12
  %v138 = vpack.c.bf16 0.0, %v136
  %139 = vst [vmem:[%s137] sm:$0xf] %v138
  %s140 = scalar_lea.vmem %s0, 664
  %v141 = vld [vmem:[%s140] sm:$0xff]
  %s142 = scalar_lea.vmem %s1, 204
  %v143 = vpack.c.bf16 0.0, %v141
  %144 = vst [vmem:[%s142] sm:$0xf] %v143
  %s145 = scalar_lea.vmem %s0, 280
  %v146 = vld [vmem:[%s145] sm:$0xff]
  %s147 = scalar_lea.vmem %s1, 396
  %v148 = vpack.c.bf16 0.0, %v146
  %149 = vst [vmem:[%s147] sm:$0xf] %v148
  %s150 = scalar_lea.vmem %s0, 920
  %v151 = vld [vmem:[%s150] sm:$0xff]
  %s152 = scalar_lea.vmem %s1, 76
  %v153 = vpack.c.bf16 0.0, %v151
  %154 = vst [vmem:[%s152] sm:$0xf] %v153
  %s155 = scalar_lea.vmem %s0, 536
  %v156 = vld [vmem:[%s155] sm:$0xff]
  %s157 = scalar_lea.vmem %s1, 268
  %v158 = vpack.c.bf16 0.0, %v156
  %159 = vst [vmem:[%s157] sm:$0xf] %v158
  %s160 = scalar_lea.vmem %s0, 152
  %v161 = vld [vmem:[%s160] sm:$0xff]
  %s162 = scalar_lea.vmem %s1, 460
  %v163 = vpack.c.bf16 0.0, %v161
  %164 = vst [vmem:[%s162] sm:$0xf] %v163
  %s165 = scalar_lea.vmem %s0, 792
  %v166 = vld [vmem:[%s165] sm:$0xff]
  %s167 = scalar_lea.vmem %s1, 140
  %v168 = vpack.c.bf16 0.0, %v166
  %169 = vst [vmem:[%s167] sm:$0xf] %v168
  %s170 = scalar_lea.vmem %s0, 408
  %v171 = vld [vmem:[%s170] sm:$0xff]
  %s172 = scalar_lea.vmem %s1, 332
  %v173 = vpack.c.bf16 0.0, %v171
  %174 = vst [vmem:[%s172] sm:$0xf] %v173
  %s175 = scalar_lea.vmem %s0, 24
  %v176 = vld [vmem:[%s175] sm:$0xff]
  %s177 = scalar_lea.vmem %s1, 524
  %v178 = vpack.c.bf16 0.0, %v176
  %179 = vst [vmem:[%s177] sm:$0xf] %v178
  %s180 = scalar_lea.vmem %s0, 1056
  %v181 = vld [vmem:[%s180] sm:$0xff]
  %s182 = scalar_lea.vmem %s1, 16
  %v183 = vpack.c.bf16 0.0, %v181
  %184 = vst [vmem:[%s182] sm:$0xf] %v183
  %s185 = scalar_lea.vmem %s0, 672
  %v186 = vld [vmem:[%s185] sm:$0xff]
  %s187 = scalar_lea.vmem %s1, 208
  %v188 = vpack.c.bf16 0.0, %v186
  %189 = vst [vmem:[%s187] sm:$0xf] %v188
  %s190 = scalar_lea.vmem %s0, 288
  %v191 = vld [vmem:[%s190] sm:$0xff]
  %s192 = scalar_lea.vmem %s1, 400
  %v193 = vpack.c.bf16 0.0, %v191
  %194 = vst [vmem:[%s192] sm:$0xf] %v193
  %s195 = scalar_lea.vmem %s0, 928
  %v196 = vld [vmem:[%s195] sm:$0xff]
  %s197 = scalar_lea.vmem %s1, 80
  %v198 = vpack.c.bf16 0.0, %v196
  %199 = vst [vmem:[%s197] sm:$0xf] %v198
  %s200 = scalar_lea.vmem %s0, 544
  %v201 = vld [vmem:[%s200] sm:$0xff]
  %s202 = scalar_lea.vmem %s1, 272
  %v203 = vpack.c.bf16 0.0, %v201
  %204 = vst [vmem:[%s202] sm:$0xf] %v203
  %s205 = scalar_lea.vmem %s0, 160
  %v206 = vld [vmem:[%s205] sm:$0xff]
  %s207 = scalar_lea.vmem %s1, 464
  %v208 = vpack.c.bf16 0.0, %v206
  %209 = vst [vmem:[%s207] sm:$0xf] %v208
  %s210 = scalar_lea.vmem %s0, 800
  %v211 = vld [vmem:[%s210] sm:$0xff]
  %s212 = scalar_lea.vmem %s1, 144
  %v213 = vpack.c.bf16 0.0, %v211
  %214 = vst [vmem:[%s212] sm:$0xf] %v213
  %s215 = scalar_lea.vmem %s0, 416
  %v216 = vld [vmem:[%s215] sm:$0xff]
  %s217 = scalar_lea.vmem %s1, 336
  %v218 = vpack.c.bf16 0.0, %v216
  %219 = vst [vmem:[%s217] sm:$0xf] %v218
  %s220 = scalar_lea.vmem %s0, 32
  %v221 = vld [vmem:[%s220] sm:$0xff]
  %s222 = scalar_lea.vmem %s1, 528
  %v223 = vpack.c.bf16 0.0, %v221
  %224 = vst [vmem:[%s222] sm:$0xf] %v223
  %s225 = scalar_lea.vmem %s0, 1064
  %v226 = vld [vmem:[%s225] sm:$0xff]
  %s227 = scalar_lea.vmem %s1, 20
  %v228 = vpack.c.bf16 0.0, %v226
  %229 = vst [vmem:[%s227] sm:$0xf] %v228
  %s230 = scalar_lea.vmem %s0, 680
  %v231 = vld [vmem:[%s230] sm:$0xff]
  %s232 = scalar_lea.vmem %s1, 212
  %v233 = vpack.c.bf16 0.0, %v231
  %234 = vst [vmem:[%s232] sm:$0xf] %v233
  %s235 = scalar_lea.vmem %s0, 296
  %v236 = vld [vmem:[%s235] sm:$0xff]
  %s237 = scalar_lea.vmem %s1, 404
  %v238 = vpack.c.bf16 0.0, %v236
  %239 = vst [vmem:[%s237] sm:$0xf] %v238
  %s240 = scalar_lea.vmem %s0, 936
  %v241 = vld [vmem:[%s240] sm:$0xff]
  %s242 = scalar_lea.vmem %s1, 84
  %v243 = vpack.c.bf16 0.0, %v241
  %244 = vst [vmem:[%s242] sm:$0xf] %v243
  %s245 = scalar_lea.vmem %s0, 552
  %v246 = vld [vmem:[%s245] sm:$0xff]
  %s247 = scalar_lea.vmem %s1, 276
  %v248 = vpack.c.bf16 0.0, %v246
  %249 = vst [vmem:[%s247] sm:$0xf] %v248
  %s250 = scalar_lea.vmem %s0, 168
  %v251 = vld [vmem:[%s250] sm:$0xff]
  %s252 = scalar_lea.vmem %s1, 468
  %v253 = vpack.c.bf16 0.0, %v251
  %254 = vst [vmem:[%s252] sm:$0xf] %v253
  %s255 = scalar_lea.vmem %s0, 808
  %v256 = vld [vmem:[%s255] sm:$0xff]
  %s257 = scalar_lea.vmem %s1, 148
  %v258 = vpack.c.bf16 0.0, %v256
  %259 = vst [vmem:[%s257] sm:$0xf] %v258
  %s260 = scalar_lea.vmem %s0, 424
  %v261 = vld [vmem:[%s260] sm:$0xff]
  %s262 = scalar_lea.vmem %s1, 340
  %v263 = vpack.c.bf16 0.0, %v261
  %264 = vst [vmem:[%s262] sm:$0xf] %v263
  %s265 = scalar_lea.vmem %s0, 40
  %v266 = vld [vmem:[%s265] sm:$0xff]
  %s267 = scalar_lea.vmem %s1, 532
  %v268 = vpack.c.bf16 0.0, %v266
  %269 = vst [vmem:[%s267] sm:$0xf] %v268
  %s270 = scalar_lea.vmem %s0, 1072
  %v271 = vld [vmem:[%s270] sm:$0xff]
  %s272 = scalar_lea.vmem %s1, 24
  %v273 = vpack.c.bf16 0.0, %v271
  %274 = vst [vmem:[%s272] sm:$0xf] %v273
  %s275 = scalar_lea.vmem %s0, 688
  %v276 = vld [vmem:[%s275] sm:$0xff]
  %s277 = scalar_lea.vmem %s1, 216
  %v278 = vpack.c.bf16 0.0, %v276
  %279 = vst [vmem:[%s277] sm:$0xf] %v278
  %s280 = scalar_lea.vmem %s0, 304
  %v281 = vld [vmem:[%s280] sm:$0xff]
  %s282 = scalar_lea.vmem %s1, 408
  %v283 = vpack.c.bf16 0.0, %v281
  %284 = vst [vmem:[%s282] sm:$0xf] %v283
  %s285 = scalar_lea.vmem %s0, 944
  %v286 = vld [vmem:[%s285] sm:$0xff]
  %s287 = scalar_lea.vmem %s1, 88
  %v288 = vpack.c.bf16 0.0, %v286
  %289 = vst [vmem:[%s287] sm:$0xf] %v288
  %s290 = scalar_lea.vmem %s0, 560
  %v291 = vld [vmem:[%s290] sm:$0xff]
  %s292 = scalar_lea.vmem %s1, 280
  %v293 = vpack.c.bf16 0.0, %v291
  %294 = vst [vmem:[%s292] sm:$0xf] %v293
  %s295 = scalar_lea.vmem %s0, 176
  %v296 = vld [vmem:[%s295] sm:$0xff]
  %s297 = scalar_lea.vmem %s1, 472
  %v298 = vpack.c.bf16 0.0, %v296
  %299 = vst [vmem:[%s297] sm:$0xf] %v298
  %s300 = scalar_lea.vmem %s0, 816
  %v301 = vld [vmem:[%s300] sm:$0xff]
  %s302 = scalar_lea.vmem %s1, 152
  %v303 = vpack.c.bf16 0.0, %v301
  %304 = vst [vmem:[%s302] sm:$0xf] %v303
  %s305 = scalar_lea.vmem %s0, 432
  %v306 = vld [vmem:[%s305] sm:$0xff]
  %s307 = scalar_lea.vmem %s1, 344
  %v308 = vpack.c.bf16 0.0, %v306
  %309 = vst [vmem:[%s307] sm:$0xf] %v308
  %s310 = scalar_lea.vmem %s0, 48
  %v311 = vld [vmem:[%s310] sm:$0xff]
  %s312 = scalar_lea.vmem %s1, 536
  %v313 = vpack.c.bf16 0.0, %v311
  %314 = vst [vmem:[%s312] sm:$0xf] %v313
  %s315 = scalar_lea.vmem %s0, 1080
  %v316 = vld [vmem:[%s315] sm:$0xff]
  %s317 = scalar_lea.vmem %s1, 28
  %v318 = vpack.c.bf16 0.0, %v316
  %319 = vst [vmem:[%s317] sm:$0xf] %v318
  %s320 = scalar_lea.vmem %s0, 696
  %v321 = vld [vmem:[%s320] sm:$0xff]
  %s322 = scalar_lea.vmem %s1, 220
  %v323 = vpack.c.bf16 0.0, %v321
  %324 = vst [vmem:[%s322] sm:$0xf] %v323
  %s325 = scalar_lea.vmem %s0, 312
  %v326 = vld [vmem:[%s325] sm:$0xff]
  %s327 = scalar_lea.vmem %s1, 412
  %v328 = vpack.c.bf16 0.0, %v326
  %329 = vst [vmem:[%s327] sm:$0xf] %v328
  %s330 = scalar_lea.vmem %s0, 952
  %v331 = vld [vmem:[%s330] sm:$0xff]
  %s332 = scalar_lea.vmem %s1, 92
  %v333 = vpack.c.bf16 0.0, %v331
  %334 = vst [vmem:[%s332] sm:$0xf] %v333
  %s335 = scalar_lea.vmem %s0, 568
  %v336 = vld [vmem:[%s335] sm:$0xff]
  %s337 = scalar_lea.vmem %s1, 284
  %v338 = vpack.c.bf16 0.0, %v336
  %339 = vst [vmem:[%s337] sm:$0xf] %v338
  %s340 = scalar_lea.vmem %s0, 184
  %v341 = vld [vmem:[%s340] sm:$0xff]
  %s342 = scalar_lea.vmem %s1, 476
  %v343 = vpack.c.bf16 0.0, %v341
  %344 = vst [vmem:[%s342] sm:$0xf] %v343
  %s345 = scalar_lea.vmem %s0, 824
  %v346 = vld [vmem:[%s345] sm:$0xff]
  %s347 = scalar_lea.vmem %s1, 156
  %v348 = vpack.c.bf16 0.0, %v346
  %349 = vst [vmem:[%s347] sm:$0xf] %v348
  %s350 = scalar_lea.vmem %s0, 440
  %v351 = vld [vmem:[%s350] sm:$0xff]
  %s352 = scalar_lea.vmem %s1, 348
  %v353 = vpack.c.bf16 0.0, %v351
  %354 = vst [vmem:[%s352] sm:$0xf] %v353
  %s355 = scalar_lea.vmem %s0, 56
  %v356 = vld [vmem:[%s355] sm:$0xff]
  %s357 = scalar_lea.vmem %s1, 540
  %v358 = vpack.c.bf16 0.0, %v356
  %359 = vst [vmem:[%s357] sm:$0xf] %v358
  %s360 = scalar_lea.vmem %s0, 1088
  %v361 = vld [vmem:[%s360] sm:$0xff]
  %s362 = scalar_lea.vmem %s1, 32
  %v363 = vpack.c.bf16 0.0, %v361
  %364 = vst [vmem:[%s362] sm:$0xf] %v363
  %s365 = scalar_lea.vmem %s0, 704
  %v366 = vld [vmem:[%s365] sm:$0xff]
  %s367 = scalar_lea.vmem %s1, 224
  %v368 = vpack.c.bf16 0.0, %v366
  %369 = vst [vmem:[%s367] sm:$0xf] %v368
  %s370 = scalar_lea.vmem %s0, 320
  %v371 = vld [vmem:[%s370] sm:$0xff]
  %s372 = scalar_lea.vmem %s1, 416
  %v373 = vpack.c.bf16 0.0, %v371
  %374 = vst [vmem:[%s372] sm:$0xf] %v373
  %s375 = scalar_lea.vmem %s0, 960
  %v376 = vld [vmem:[%s375] sm:$0xff]
  %s377 = scalar_lea.vmem %s1, 96
  %v378 = vpack.c.bf16 0.0, %v376
  %379 = vst [vmem:[%s377] sm:$0xf] %v378
  %s380 = scalar_lea.vmem %s0, 576
  %v381 = vld [vmem:[%s380] sm:$0xff]
  %s382 = scalar_lea.vmem %s1, 288
  %v383 = vpack.c.bf16 0.0, %v381
  %384 = vst [vmem:[%s382] sm:$0xf] %v383
  %s385 = scalar_lea.vmem %s0, 192
  %v386 = vld [vmem:[%s385] sm:$0xff]
  %s387 = scalar_lea.vmem %s1, 480
  %v388 = vpack.c.bf16 0.0, %v386
  %389 = vst [vmem:[%s387] sm:$0xf] %v388
  %s390 = scalar_lea.vmem %s0, 832
  %v391 = vld [vmem:[%s390] sm:$0xff]
  %s392 = scalar_lea.vmem %s1, 160
  %v393 = vpack.c.bf16 0.0, %v391
  %394 = vst [vmem:[%s392] sm:$0xf] %v393
  %s395 = scalar_lea.vmem %s0, 448
  %v396 = vld [vmem:[%s395] sm:$0xff]
  %s397 = scalar_lea.vmem %s1, 352
  %v398 = vpack.c.bf16 0.0, %v396
  %399 = vst [vmem:[%s397] sm:$0xf] %v398
  %s400 = scalar_lea.vmem %s0, 64
  %v401 = vld [vmem:[%s400] sm:$0xff]
  %s402 = scalar_lea.vmem %s1, 544
  %v403 = vpack.c.bf16 0.0, %v401
  %404 = vst [vmem:[%s402] sm:$0xf] %v403
  %s405 = scalar_lea.vmem %s0, 1096
  %v406 = vld [vmem:[%s405] sm:$0xff]
  %s407 = scalar_lea.vmem %s1, 36
  %v408 = vpack.c.bf16 0.0, %v406
  %409 = vst [vmem:[%s407] sm:$0xf] %v408
  %s410 = scalar_lea.vmem %s0, 712
  %v411 = vld [vmem:[%s410] sm:$0xff]
  %s412 = scalar_lea.vmem %s1, 228
  %v413 = vpack.c.bf16 0.0, %v411
  %414 = vst [vmem:[%s412] sm:$0xf] %v413
  %s415 = scalar_lea.vmem %s0, 328
  %v416 = vld [vmem:[%s415] sm:$0xff]
  %s417 = scalar_lea.vmem %s1, 420
  %v418 = vpack.c.bf16 0.0, %v416
  %419 = vst [vmem:[%s417] sm:$0xf] %v418
  %s420 = scalar_lea.vmem %s0, 968
  %v421 = vld [vmem:[%s420] sm:$0xff]
  %s422 = scalar_lea.vmem %s1, 100
  %v423 = vpack.c.bf16 0.0, %v421
  %424 = vst [vmem:[%s422] sm:$0xf] %v423
  %s425 = scalar_lea.vmem %s0, 584
  %v426 = vld [vmem:[%s425] sm:$0xff]
  %s427 = scalar_lea.vmem %s1, 292
  %v428 = vpack.c.bf16 0.0, %v426
  %429 = vst [vmem:[%s427] sm:$0xf] %v428
  %s430 = scalar_lea.vmem %s0, 200
  %v431 = vld [vmem:[%s430] sm:$0xff]
  %s432 = scalar_lea.vmem %s1, 484
  %v433 = vpack.c.bf16 0.0, %v431
  %434 = vst [vmem:[%s432] sm:$0xf] %v433
  %s435 = scalar_lea.vmem %s0, 840
  %v436 = vld [vmem:[%s435] sm:$0xff]
  %s437 = scalar_lea.vmem %s1, 164
  %v438 = vpack.c.bf16 0.0, %v436
  %439 = vst [vmem:[%s437] sm:$0xf] %v438
  %s440 = scalar_lea.vmem %s0, 456
  %v441 = vld [vmem:[%s440] sm:$0xff]
  %s442 = scalar_lea.vmem %s1, 356
  %v443 = vpack.c.bf16 0.0, %v441
  %444 = vst [vmem:[%s442] sm:$0xf] %v443
  %s445 = scalar_lea.vmem %s0, 72
  %v446 = vld [vmem:[%s445] sm:$0xff]
  %s447 = scalar_lea.vmem %s1, 548
  %v448 = vpack.c.bf16 0.0, %v446
  %449 = vst [vmem:[%s447] sm:$0xf] %v448
  %s450 = scalar_lea.vmem %s0, 1104
  %v451 = vld [vmem:[%s450] sm:$0xff]
  %s452 = scalar_lea.vmem %s1, 40
  %v453 = vpack.c.bf16 0.0, %v451
  %454 = vst [vmem:[%s452] sm:$0xf] %v453
  %s455 = scalar_lea.vmem %s0, 720
  %v456 = vld [vmem:[%s455] sm:$0xff]
  %s457 = scalar_lea.vmem %s1, 232
  %v458 = vpack.c.bf16 0.0, %v456
  %459 = vst [vmem:[%s457] sm:$0xf] %v458
  %s460 = scalar_lea.vmem %s0, 336
  %v461 = vld [vmem:[%s460] sm:$0xff]
  %s462 = scalar_lea.vmem %s1, 424
  %v463 = vpack.c.bf16 0.0, %v461
  %464 = vst [vmem:[%s462] sm:$0xf] %v463
  %s465 = scalar_lea.vmem %s0, 976
  %v466 = vld [vmem:[%s465] sm:$0xff]
  %s467 = scalar_lea.vmem %s1, 104
  %v468 = vpack.c.bf16 0.0, %v466
  %469 = vst [vmem:[%s467] sm:$0xf] %v468
  %s470 = scalar_lea.vmem %s0, 592
  %v471 = vld [vmem:[%s470] sm:$0xff]
  %s472 = scalar_lea.vmem %s1, 296
  %v473 = vpack.c.bf16 0.0, %v471
  %474 = vst [vmem:[%s472] sm:$0xf] %v473
  %s475 = scalar_lea.vmem %s0, 208
  %v476 = vld [vmem:[%s475] sm:$0xff]
  %s477 = scalar_lea.vmem %s1, 488
  %v478 = vpack.c.bf16 0.0, %v476
  %479 = vst [vmem:[%s477] sm:$0xf] %v478
  %s480 = scalar_lea.vmem %s0, 848
  %v481 = vld [vmem:[%s480] sm:$0xff]
  %s482 = scalar_lea.vmem %s1, 168
  %v483 = vpack.c.bf16 0.0, %v481
  %484 = vst [vmem:[%s482] sm:$0xf] %v483
  %s485 = scalar_lea.vmem %s0, 464
  %v486 = vld [vmem:[%s485] sm:$0xff]
  %s487 = scalar_lea.vmem %s1, 360
  %v488 = vpack.c.bf16 0.0, %v486
  %489 = vst [vmem:[%s487] sm:$0xf] %v488
  %s490 = scalar_lea.vmem %s0, 80
  %v491 = vld [vmem:[%s490] sm:$0xff]
  %s492 = scalar_lea.vmem %s1, 552
  %v493 = vpack.c.bf16 0.0, %v491
  %494 = vst [vmem:[%s492] sm:$0xf] %v493
  %s495 = scalar_lea.vmem %s0, 1112
  %v496 = vld [vmem:[%s495] sm:$0xff]
  %s497 = scalar_lea.vmem %s1, 44
  %v498 = vpack.c.bf16 0.0, %v496
  %499 = vst [vmem:[%s497] sm:$0xf] %v498
  %s500 = scalar_lea.vmem %s0, 728
  %v501 = vld [vmem:[%s500] sm:$0xff]
  %s502 = scalar_lea.vmem %s1, 236
  %v503 = vpack.c.bf16 0.0, %v501
  %504 = vst [vmem:[%s502] sm:$0xf] %v503
  %s505 = scalar_lea.vmem %s0, 344
  %v506 = vld [vmem:[%s505] sm:$0xff]
  %s507 = scalar_lea.vmem %s1, 428
  %v508 = vpack.c.bf16 0.0, %v506
  %509 = vst [vmem:[%s507] sm:$0xf] %v508
  %s510 = scalar_lea.vmem %s0, 984
  %v511 = vld [vmem:[%s510] sm:$0xff]
  %s512 = scalar_lea.vmem %s1, 108
  %v513 = vpack.c.bf16 0.0, %v511
  %514 = vst [vmem:[%s512] sm:$0xf] %v513
  %s515 = scalar_lea.vmem %s0, 600
  %v516 = vld [vmem:[%s515] sm:$0xff]
  %s517 = scalar_lea.vmem %s1, 300
  %v518 = vpack.c.bf16 0.0, %v516
  %519 = vst [vmem:[%s517] sm:$0xf] %v518
  %s520 = scalar_lea.vmem %s0, 216
  %v521 = vld [vmem:[%s520] sm:$0xff]
  %s522 = scalar_lea.vmem %s1, 492
  %v523 = vpack.c.bf16 0.0, %v521
  %524 = vst [vmem:[%s522] sm:$0xf] %v523
  %s525 = scalar_lea.vmem %s0, 856
  %v526 = vld [vmem:[%s525] sm:$0xff]
  %s527 = scalar_lea.vmem %s1, 172
  %v528 = vpack.c.bf16 0.0, %v526
  %529 = vst [vmem:[%s527] sm:$0xf] %v528
  %s530 = scalar_lea.vmem %s0, 472
  %v531 = vld [vmem:[%s530] sm:$0xff]
  %s532 = scalar_lea.vmem %s1, 364
  %v533 = vpack.c.bf16 0.0, %v531
  %534 = vst [vmem:[%s532] sm:$0xf] %v533
  %s535 = scalar_lea.vmem %s0, 88
  %v536 = vld [vmem:[%s535] sm:$0xff]
  %s537 = scalar_lea.vmem %s1, 556
  %v538 = vpack.c.bf16 0.0, %v536
  %539 = vst [vmem:[%s537] sm:$0xf] %v538
  %s540 = scalar_lea.vmem %s0, 1120
  %v541 = vld [vmem:[%s540] sm:$0xff]
  %s542 = scalar_lea.vmem %s1, 48
  %v543 = vpack.c.bf16 0.0, %v541
  %544 = vst [vmem:[%s542] sm:$0xf] %v543
  %s545 = scalar_lea.vmem %s0, 736
  %v546 = vld [vmem:[%s545] sm:$0xff]
  %s547 = scalar_lea.vmem %s1, 240
  %v548 = vpack.c.bf16 0.0, %v546
  %549 = vst [vmem:[%s547] sm:$0xf] %v548
  %s550 = scalar_lea.vmem %s0, 352
  %v551 = vld [vmem:[%s550] sm:$0xff]
  %s552 = scalar_lea.vmem %s1, 432
  %v553 = vpack.c.bf16 0.0, %v551
  %554 = vst [vmem:[%s552] sm:$0xf] %v553
  %s555 = scalar_lea.vmem %s0, 992
  %v556 = vld [vmem:[%s555] sm:$0xff]
  %s557 = scalar_lea.vmem %s1, 112
  %v558 = vpack.c.bf16 0.0, %v556
  %559 = vst [vmem:[%s557] sm:$0xf] %v558
  %s560 = scalar_lea.vmem %s0, 608
  %v561 = vld [vmem:[%s560] sm:$0xff]
  %s562 = scalar_lea.vmem %s1, 304
  %v563 = vpack.c.bf16 0.0, %v561
  %564 = vst [vmem:[%s562] sm:$0xf] %v563
  %s565 = scalar_lea.vmem %s0, 224
  %v566 = vld [vmem:[%s565] sm:$0xff]
  %s567 = scalar_lea.vmem %s1, 496
  %v568 = vpack.c.bf16 0.0, %v566
  %569 = vst [vmem:[%s567] sm:$0xf] %v568
  %s570 = scalar_lea.vmem %s0, 864
  %v571 = vld [vmem:[%s570] sm:$0xff]
  %s572 = scalar_lea.vmem %s1, 176
  %v573 = vpack.c.bf16 0.0, %v571
  %574 = vst [vmem:[%s572] sm:$0xf] %v573
  %s575 = scalar_lea.vmem %s0, 480
  %v576 = vld [vmem:[%s575] sm:$0xff]
  %s577 = scalar_lea.vmem %s1, 368
  %v578 = vpack.c.bf16 0.0, %v576
  %579 = vst [vmem:[%s577] sm:$0xf] %v578
  %s580 = scalar_lea.vmem %s0, 96
  %v581 = vld [vmem:[%s580] sm:$0xff]
  %s582 = scalar_lea.vmem %s1, 560
  %v583 = vpack.c.bf16 0.0, %v581
  %584 = vst [vmem:[%s582] sm:$0xf] %v583
  %s585 = scalar_lea.vmem %s0, 1128
  %v586 = vld [vmem:[%s585] sm:$0xff]
  %s587 = scalar_lea.vmem %s1, 52
  %v588 = vpack.c.bf16 0.0, %v586
  %589 = vst [vmem:[%s587] sm:$0xf] %v588
  %s590 = scalar_lea.vmem %s0, 744
  %v591 = vld [vmem:[%s590] sm:$0xff]
  %s592 = scalar_lea.vmem %s1, 244
  %v593 = vpack.c.bf16 0.0, %v591
  %594 = vst [vmem:[%s592] sm:$0xf] %v593
  %s595 = scalar_lea.vmem %s0, 360
  %v596 = vld [vmem:[%s595] sm:$0xff]
  %s597 = scalar_lea.vmem %s1, 436
  %v598 = vpack.c.bf16 0.0, %v596
  %599 = vst [vmem:[%s597] sm:$0xf] %v598
  %s600 = scalar_lea.vmem %s0, 1000
  %v601 = vld [vmem:[%s600] sm:$0xff]
  %s602 = scalar_lea.vmem %s1, 116
  %v603 = vpack.c.bf16 0.0, %v601
  %604 = vst [vmem:[%s602] sm:$0xf] %v603
  %s605 = scalar_lea.vmem %s0, 616
  %v606 = vld [vmem:[%s605] sm:$0xff]
  %s607 = scalar_lea.vmem %s1, 308
  %v608 = vpack.c.bf16 0.0, %v606
  %609 = vst [vmem:[%s607] sm:$0xf] %v608
  %s610 = scalar_lea.vmem %s0, 232
  %v611 = vld [vmem:[%s610] sm:$0xff]
  %s612 = scalar_lea.vmem %s1, 500
  %v613 = vpack.c.bf16 0.0, %v611
  %614 = vst [vmem:[%s612] sm:$0xf] %v613
  %s615 = scalar_lea.vmem %s0, 872
  %v616 = vld [vmem:[%s615] sm:$0xff]
  %s617 = scalar_lea.vmem %s1, 180
  %v618 = vpack.c.bf16 0.0, %v616
  %619 = vst [vmem:[%s617] sm:$0xf] %v618
  %s620 = scalar_lea.vmem %s0, 488
  %v621 = vld [vmem:[%s620] sm:$0xff]
  %s622 = scalar_lea.vmem %s1, 372
  %v623 = vpack.c.bf16 0.0, %v621
  %624 = vst [vmem:[%s622] sm:$0xf] %v623
  %s625 = scalar_lea.vmem %s0, 104
  %v626 = vld [vmem:[%s625] sm:$0xff]
  %s627 = scalar_lea.vmem %s1, 564
  %v628 = vpack.c.bf16 0.0, %v626
  %629 = vst [vmem:[%s627] sm:$0xf] %v628
  %s630 = scalar_lea.vmem %s0, 1136
  %v631 = vld [vmem:[%s630] sm:$0xff]
  %s632 = scalar_lea.vmem %s1, 56
  %v633 = vpack.c.bf16 0.0, %v631
  %634 = vst [vmem:[%s632] sm:$0xf] %v633
  %s635 = scalar_lea.vmem %s0, 752
  %v636 = vld [vmem:[%s635] sm:$0xff]
  %s637 = scalar_lea.vmem %s1, 248
  %v638 = vpack.c.bf16 0.0, %v636
  %639 = vst [vmem:[%s637] sm:$0xf] %v638
  %s640 = scalar_lea.vmem %s0, 368
  %v641 = vld [vmem:[%s640] sm:$0xff]
  %s642 = scalar_lea.vmem %s1, 440
  %v643 = vpack.c.bf16 0.0, %v641
  %644 = vst [vmem:[%s642] sm:$0xf] %v643
  %s645 = scalar_lea.vmem %s0, 1008
  %v646 = vld [vmem:[%s645] sm:$0xff]
  %s647 = scalar_lea.vmem %s1, 120
  %v648 = vpack.c.bf16 0.0, %v646
  %649 = vst [vmem:[%s647] sm:$0xf] %v648
  %s650 = scalar_lea.vmem %s0, 624
  %v651 = vld [vmem:[%s650] sm:$0xff]
  %s652 = scalar_lea.vmem %s1, 312
  %v653 = vpack.c.bf16 0.0, %v651
  %654 = vst [vmem:[%s652] sm:$0xf] %v653
  %s655 = scalar_lea.vmem %s0, 240
  %v656 = vld [vmem:[%s655] sm:$0xff]
  %s657 = scalar_lea.vmem %s1, 504
  %v658 = vpack.c.bf16 0.0, %v656
  %659 = vst [vmem:[%s657] sm:$0xf] %v658
  %s660 = scalar_lea.vmem %s0, 880
  %v661 = vld [vmem:[%s660] sm:$0xff]
  %s662 = scalar_lea.vmem %s1, 184
  %v663 = vpack.c.bf16 0.0, %v661
  %664 = vst [vmem:[%s662] sm:$0xf] %v663
  %s665 = scalar_lea.vmem %s0, 496
  %v666 = vld [vmem:[%s665] sm:$0xff]
  %s667 = scalar_lea.vmem %s1, 376
  %v668 = vpack.c.bf16 0.0, %v666
  %669 = vst [vmem:[%s667] sm:$0xf] %v668
  %s670 = scalar_lea.vmem %s0, 112
  %v671 = vld [vmem:[%s670] sm:$0xff]
  %s672 = scalar_lea.vmem %s1, 568
  %v673 = vpack.c.bf16 0.0, %v671
  %674 = vst [vmem:[%s672] sm:$0xf] %v673
  %s675 = scalar_lea.vmem %s0, 1144
  %v676 = vld [vmem:[%s675] sm:$0xff]
  %s677 = scalar_lea.vmem %s1, 60
  %v678 = vpack.c.bf16 0.0, %v676
  %679 = vst [vmem:[%s677] sm:$0xf] %v678
  %s680 = scalar_lea.vmem %s0, 760
  %v681 = vld [vmem:[%s680] sm:$0xff]
  %s682 = scalar_lea.vmem %s1, 252
  %v683 = vpack.c.bf16 0.0, %v681
  %684 = vst [vmem:[%s682] sm:$0xf] %v683
  %s685 = scalar_lea.vmem %s0, 376
  %v686 = vld [vmem:[%s685] sm:$0xff]
  %s687 = scalar_lea.vmem %s1, 444
  %v688 = vpack.c.bf16 0.0, %v686
  %689 = vst [vmem:[%s687] sm:$0xf] %v688
  %s690 = scalar_lea.vmem %s0, 1016
  %v691 = vld [vmem:[%s690] sm:$0xff]
  %s692 = scalar_lea.vmem %s1, 124
  %v693 = vpack.c.bf16 0.0, %v691
  %694 = vst [vmem:[%s692] sm:$0xf] %v693
  %s695 = scalar_lea.vmem %s0, 632
  %v696 = vld [vmem:[%s695] sm:$0xff]
  %s697 = scalar_lea.vmem %s1, 316
  %v698 = vpack.c.bf16 0.0, %v696
  %699 = vst [vmem:[%s697] sm:$0xf] %v698
  %s700 = scalar_lea.vmem %s0, 248
  %v701 = vld [vmem:[%s700] sm:$0xff]
  %s702 = scalar_lea.vmem %s1, 508
  %v703 = vpack.c.bf16 0.0, %v701
  %704 = vst [vmem:[%s702] sm:$0xf] %v703
  %s705 = scalar_lea.vmem %s0, 888
  %v706 = vld [vmem:[%s705] sm:$0xff]
  %s707 = scalar_lea.vmem %s1, 188
  %v708 = vpack.c.bf16 0.0, %v706
  %709 = vst [vmem:[%s707] sm:$0xf] %v708
  %s710 = scalar_lea.vmem %s0, 504
  %v711 = vld [vmem:[%s710] sm:$0xff]
  %s712 = scalar_lea.vmem %s1, 380
  %v713 = vpack.c.bf16 0.0, %v711
  %714 = vst [vmem:[%s712] sm:$0xf] %v713
  %s715 = scalar_lea.vmem %s0, 120
  %v716 = vld [vmem:[%s715] sm:$0xff]
  %s717 = scalar_lea.vmem %s1, 572
  %v718 = vpack.c.bf16 0.0, %v716
  %719 = vst [vmem:[%s717] sm:$0xf] %v718

// kernel: source_model_forward.1
$region0: #{source_model_forward.1}
  #allocation0 [shape = 'u32[]', space=smem, size = 0x4, offset = 0x4, fixed_abs, tag = 'smem constant byte address 0x4 - core index']
  #allocation1 [shape = 'u32[72,128]{1,0:T(1,128)}', space=vmem, size = 0x9000, scoped, tag = 'internal scratch']
  %s0 = inlined_call_operand.vmem [shape: f32[2,512], index: 0, kind: input, shape index: {}]
  %s1 = inlined_call_operand.vmem [shape: f32[2,256], index: 1, kind: input, shape index: {}]
  %s2 = inlined_call_operand.vmem [shape: f32[2,512], index: 2, kind: input, shape index: {}]
  %s3 = inlined_call_operand.vmem [shape: f32[2,512], index: 3, kind: input, shape index: {}]
  %s4 = inlined_call_operand.vmem [shape: f32[2,128], index: 4, kind: input, shape index: {}]
  %s5 = inlined_call_operand.vmem [shape: f32[1,1920], index: 5, kind: input, shape index: {}]
  %s6 = inlined_call_operand.vmem [shape: f32[1,1920], index: 6, kind: input, shape index: {}]
  %s7 = inlined_call_operand.vmem [shape: bf16[2048,128], index: 7, kind: input, shape index: {}]
  %s8 = inlined_call_operand.vmem [shape: f32[1,128], index: 8, kind: input, shape index: {}]
  %s9 = inlined_call_operand.hbm [shape: f32[2,128], index: 9, kind: output, shape index: {}]
  %s10 = sld [smem:[#allocation0]]
  $region46: #{source_model_forward.1} parent=0
    _
  %s12 = ssub.s32 1, %s10
  %s13 = scalar_select 0, %s12, %s10
  $region1: #{source_model_forward.1} parent=0
    #allocation2 [shape = 'u8[1024]{0}', space=vmem, size = 0x400, scoped, tag = 'output window, operand 0, single buffered']
    #allocation3 [shape = 's32[1]{0}', space=sflag, size = 0x4, scoped, tag = 'scoped memory for source_model_forward.1']
    %14 = vsyncpa [#allocation3], 0
    // Predicated region
    $region2: #{source_model_forward.1} parent=1 // pred_check
      _
    $region3: #{source_model_forward.1} parent=1 // pred_check_branch
      %16 = sbr.rel (0) target = $region5
    $region4: #{source_model_forward.1} parent=1 // pred_region
      _
    $region5: #{source_model_forward.1} parent=1 // pred_fallthru
      _
    // Predicated region
    $region6: #{source_model_forward.1} parent=1 // pred_check
      _
    $region7: #{source_model_forward.1} parent=1 // pred_check_branch
      %18 = sbr.rel (0) target = $region9
    $region8: #{source_model_forward.1} parent=1 // pred_region
      _
    $region9: #{source_model_forward.1} parent=1 // pred_fallthru
      _
    // Predicated region
    $region10: #{source_model_forward.1} parent=1 // pred_check
      _
    $region11: #{source_model_forward.1} parent=1 // pred_check_branch
      %20 = sbr.rel (0) target = $region13
    $region12: #{source_model_forward.1} parent=1 // pred_region
      _
    $region13: #{source_model_forward.1} parent=1 // pred_fallthru
      _
    // Predicated region
    $region14: #{source_model_forward.1} parent=1 // pred_check
      _
    $region15: #{source_model_forward.1} parent=1 // pred_check_branch
      %22 = sbr.rel (0) target = $region17
    $region16: #{source_model_forward.1} parent=1 // pred_region
      _
    $region17: #{source_model_forward.1} parent=1 // pred_fallthru
      _
    // Predicated region
    $region18: #{source_model_forward.1} parent=1 // pred_check
      _
    $region19: #{source_model_forward.1} parent=1 // pred_check_branch
      %24 = sbr.rel (0) target = $region21
    $region20: #{source_model_forward.1} parent=1 // pred_region
      _
    $region21: #{source_model_forward.1} parent=1 // pred_fallthru
      _
    // Predicated region
    $region22: #{source_model_forward.1} parent=1 // pred_check
      _
    $region23: #{source_model_forward.1} parent=1 // pred_check_branch
      %26 = sbr.rel (0) target = $region25
    $region24: #{source_model_forward.1} parent=1 // pred_region
      _
    $region25: #{source_model_forward.1} parent=1 // pred_fallthru
      _
    // Predicated region
    $region26: #{source_model_forward.1} parent=1 // pred_check
      _
    $region27: #{source_model_forward.1} parent=1 // pred_check_branch
      %28 = sbr.rel (0) target = $region29
    $region28: #{source_model_forward.1} parent=1 // pred_region
      _
    $region29: #{source_model_forward.1} parent=1 // pred_fallthru
      _
    // Predicated region
    $region30: #{source_model_forward.1} parent=1 // pred_check
      _
    $region31: #{source_model_forward.1} parent=1 // pred_check_branch
      %30 = sbr.rel (0) target = $region33
    $region32: #{source_model_forward.1} parent=1 // pred_region
      _
    $region33: #{source_model_forward.1} parent=1 // pred_fallthru
      _
    // Predicated region
    $region34: #{source_model_forward.1} parent=1 // pred_check
      _
    $region35: #{source_model_forward.1} parent=1 // pred_check_branch
      %32 = sbr.rel (0) target = $region37
    $region36: #{source_model_forward.1} parent=1 // pred_region
      _
    $region37: #{source_model_forward.1} parent=1 // pred_fallthru
      _
    %v33 = vld [vmem:[%s0] sm:$0xff]
    %35 = vst [vmem:[#allocation1] ss:$4 sm:$0xff] %v33
    %v36 = vld.sshfl [vmem:[#allocation1] sm:$0xff pattern:$0x73625140]
    %v37 = vld.sshfl [vmem:[#allocation1 + $0x8] sm:$0xff pattern:$0x73625140]
    %v38 = vld.sshfl [vmem:[#allocation1 + $0x10] sm:$0xff pattern:$0x73625140]
    %v39 = vld.sshfl [vmem:[#allocation1 + $0x18] sm:$0xff pattern:$0x73625140]
    %vm44 = vcmask 1041408
    %v45 = vsel %vm44, %v36, 0.0
    %v46 = vrot.slane %v45, 4
    %v47 = vadd.f32 %v45, %v46
    %v48 = vrot.slane %v47, 2
    %v49 = vadd.f32 %v47, %v48
    %v50 = vrot.slane %v49, 1
    %v51 = vadd.f32 %v49, %v50
    %v52 = vsel %vm44, %v37, 0.0
    %v53 = vrot.slane %v52, 4
    %v54 = vadd.f32 %v52, %v53
    %v55 = vrot.slane %v54, 2
    %v56 = vadd.f32 %v54, %v55
    %v57 = vrot.slane %v56, 1
    %v58 = vadd.f32 %v56, %v57
    %v59 = vsel %vm44, %v38, 0.0
    %v60 = vrot.slane %v59, 4
    %v61 = vadd.f32 %v59, %v60
    %v62 = vrot.slane %v61, 2
    %v63 = vadd.f32 %v61, %v62
    %v64 = vrot.slane %v63, 1
    %v65 = vadd.f32 %v63, %v64
    %v66 = vsel %vm44, %v39, 0.0
    %v67 = vrot.slane %v66, 4
    %v68 = vadd.f32 %v66, %v67
    %v69 = vrot.slane %v68, 2
    %v70 = vadd.f32 %v68, %v69
    %v71 = vrot.slane %v70, 1
    %v72 = vadd.f32 %v70, %v71
    %v73 = vmul.f32 %v51, 0.5
    %v74 = vmul.f32 %v58, 0.5
    %v75 = vmul.f32 %v65, 0.5
    %v76 = vmul.f32 %v72, 0.5
    %v81 = vrot.slane %v74, 6
    %v82 = vrot.slane %v75, 4
    %v83 = vrot.slane %v76, 2
    %v84 = vsel %vm44, %v73, %v81
    %vm85 = vcmask 1045508
    %v86 = vsel %vm85, %v82, %v83
    %vm87 = vcmask 1043456
    %v88 = vsel %vm87, %v84, %v86
    %v90 = vsub.f32 %v33, %v88
    %v91 = vmul.f32 %v90, %v90
    %93 = vst [vmem:[#allocation1] ss:$4 sm:$0xff] %v91
    %v94 = vld.sshfl [vmem:[#allocation1] sm:$0xff pattern:$0x73625140]
    %v95 = vld.sshfl [vmem:[#allocation1 + $0x8] sm:$0xff pattern:$0x73625140]
    %v96 = vld.sshfl [vmem:[#allocation1 + $0x10] sm:$0xff pattern:$0x73625140]
    %v97 = vld.sshfl [vmem:[#allocation1 + $0x18] sm:$0xff pattern:$0x73625140]
    %v102 = vsel %vm44, %v94, 0.0
    %v103 = vrot.slane %v102, 4
    %v104 = vadd.f32 %v102, %v103
    %v105 = vrot.slane %v104, 2
    %v106 = vadd.f32 %v104, %v105
    %v107 = vrot.slane %v106, 1
    %v108 = vadd.f32 %v106, %v107
    %v109 = vsel %vm44, %v95, 0.0
    %v110 = vrot.slane %v109, 4
    %v111 = vadd.f32 %v109, %v110
    %v112 = vrot.slane %v111, 2
    %v113 = vadd.f32 %v111, %v112
    %v114 = vrot.slane %v113, 1
    %v115 = vadd.f32 %v113, %v114
    %v116 = vsel %vm44, %v96, 0.0
    %v117 = vrot.slane %v116, 4
    %v118 = vadd.f32 %v116, %v117
    %v119 = vrot.slane %v118, 2
    %v120 = vadd.f32 %v118, %v119
    %v121 = vrot.slane %v120, 1
    %v122 = vadd.f32 %v120, %v121
    %v123 = vsel %vm44, %v97, 0.0
    %v124 = vrot.slane %v123, 4
    %v125 = vadd.f32 %v123, %v124
    %v126 = vrot.slane %v125, 2
    %v127 = vadd.f32 %v125, %v126
    %v128 = vrot.slane %v127, 1
    %v129 = vadd.f32 %v127, %v128
    %v130 = vmul.f32 %v108, 0.5
    %v131 = vmul.f32 %v115, 0.5
    %v132 = vmul.f32 %v122, 0.5
    %v133 = vmul.f32 %v129, 0.5
    %v134 = vld [vmem:[%s5] sm:$0xf]
    %v135 = vadd.f32 %v130, 1e-05
    %v136 = vadd.f32 %v131, 1e-05
    %v137 = vadd.f32 %v132, 1e-05
    %v138 = vadd.f32 %v133, 1e-05
    %v139 = vrsqrt.pop %v135
    %v140 = vmul.f32 %v139, %v135
    %v141 = vmul.f32 %v140, %v139
    %v142 = vmul.f32 0.5, %v141
    %v143 = vsub.f32 1.5, %v142
    %v144 = vmul.f32 %v139, %v143
    %vm145 = vweird.f32 %v135
    %vm146 = vweird.f32 %v139
    %vm147 = vmor %vm145, %vm146
    %v148 = vsel %vm147, %v139, %v144
    %v149 = vrsqrt.pop %v136
    %v150 = vmul.f32 %v149, %v136
    %v151 = vmul.f32 %v150, %v149
    %v152 = vmul.f32 0.5, %v151
    %v153 = vsub.f32 1.5, %v152
    %v154 = vmul.f32 %v149, %v153
    %vm155 = vweird.f32 %v136
    %vm156 = vweird.f32 %v149
    %vm157 = vmor %vm155, %vm156
    %v158 = vsel %vm157, %v149, %v154
    %v159 = vrsqrt.pop %v137
    %v160 = vmul.f32 %v159, %v137
    %v161 = vmul.f32 %v160, %v159
    %v162 = vmul.f32 0.5, %v161
    %v163 = vsub.f32 1.5, %v162
    %v164 = vmul.f32 %v159, %v163
    %vm165 = vweird.f32 %v137
    %vm166 = vweird.f32 %v159
    %vm167 = vmor %vm165, %vm166
    %v168 = vsel %vm167, %v159, %v164
    %v169 = vrsqrt.pop %v138
    %v170 = vmul.f32 %v169, %v138
    %v171 = vmul.f32 %v170, %v169
    %v172 = vmul.f32 0.5, %v171
    %v173 = vsub.f32 1.5, %v172
    %v174 = vmul.f32 %v169, %v173
    %vm175 = vweird.f32 %v138
    %vm176 = vweird.f32 %v169
    %vm177 = vmor %vm175, %vm176
    %v178 = vsel %vm177, %v169, %v174
    %v183 = vrot.slane %v158, 7
    %v184 = vrot.slane %v168, 6
    %v185 = vrot.slane %v178, 5
    %vm186 = vcmask 1040384
    %v187 = vsel %vm186, %v148, %v183
    %vm188 = vcmask 1042434
    %v189 = vsel %vm188, %v184, %v185
    %v190 = vsel %vm44, %v187, %v189
    %v192 = vmul.f32 %v134, %v190
    %v194 = vperm.slane %v192, 0
    %v195 = vperm.slane %v192, 1
    %v196 = vperm.slane %v192, 2
    %v197 = vperm.slane %v192, 3
    %v198 = vrot.slane %v195, 6
    %v199 = vrot.slane %v196, 4
    %v200 = vrot.slane %v197, 2
    %v201 = vsel %vm44, %v194, %v198
    %v202 = vsel %vm85, %v199, %v200
    %v203 = vsel %vm87, %v201, %v202
    %v205 = vmul.f32 %v90, %v203
    %v206 = vld [vmem:[%s6] sm:$0xf]
    %v208 = vperm.slane %v206, 0
    %v209 = vperm.slane %v206, 1
    %v210 = vperm.slane %v206, 2
    %v211 = vperm.slane %v206, 3
    %v212 = vrot.slane %v209, 6
    %v213 = vrot.slane %v210, 4
    %v214 = vrot.slane %v211, 2
    %v215 = vsel %vm44, %v208, %v212
    %v216 = vsel %vm85, %v213, %v214
    %v217 = vsel %vm87, %v215, %v216
    %v219 = vadd.f32 %v205, %v217
    %221 = vst [vmem:[#allocation1] ss:$4 sm:$0xff] %v219
    %v222 = vld.sshfl [vmem:[#allocation1] sm:$0xff pattern:$0x73625140]
    %v223 = vld.sshfl [vmem:[#allocation1 + $0x8] sm:$0xff pattern:$0x73625140]
    %v224 = vld.sshfl [vmem:[#allocation1 + $0x10] sm:$0xff pattern:$0x73625140]
    %v225 = vld.sshfl [vmem:[#allocation1 + $0x18] sm:$0xff pattern:$0x73625140]
    %v230 = vpack.c.bf16 %v222, %v222
    %v231 = vpack.c.bf16 %v223, %v223
    %v232 = vpack.c.bf16 %v224, %v224
    %v233 = vpack.c.bf16 %v225, %v225
    %v234 = vld [vmem:[%s7] sm:$0xf]
    %v235 = vld [vmem:[%s7 + $0x4] sm:$0xf]
    %v236 = vld [vmem:[%s7 + $0x8] sm:$0xf]
    %v237 = vld [vmem:[%s7 + $0xc] sm:$0xf]
    %v238 = vld [vmem:[%s7 + $0x10] sm:$0xf]
    %v239 = vld [vmem:[%s7 + $0x14] sm:$0xf]
    %v240 = vld [vmem:[%s7 + $0x18] sm:$0xf]
    %v241 = vld [vmem:[%s7 + $0x1c] sm:$0xf]
    %v242 = vld [vmem:[%s7 + $0x20] sm:$0xf]
    %v243 = vld [vmem:[%s7 + $0x24] sm:$0xf]
    %v244 = vld [vmem:[%s7 + $0x28] sm:$0xf]
    %v245 = vld [vmem:[%s7 + $0x2c] sm:$0xf]
    %v246 = vld [vmem:[%s7 + $0x30] sm:$0xf]
    %v247 = vld [vmem:[%s7 + $0x34] sm:$0xf]
    %v248 = vld [vmem:[%s7 + $0x38] sm:$0xf]
    %v249 = vld [vmem:[%s7 + $0x3c] sm:$0xf]
    %v250 = vld [vmem:[%s7 + $0x40] sm:$0xf]
    %v251 = vld [vmem:[%s7 + $0x44] sm:$0xf]
    %v252 = vld [vmem:[%s7 + $0x48] sm:$0xf]
    %v253 = vld [vmem:[%s7 + $0x4c] sm:$0xf]
    %v254 = vld [vmem:[%s7 + $0x50] sm:$0xf]
    %v255 = vld [vmem:[%s7 + $0x54] sm:$0xf]
    %v256 = vld [vmem:[%s7 + $0x58] sm:$0xf]
    %v257 = vld [vmem:[%s7 + $0x5c] sm:$0xf]
    %v258 = vld [vmem:[%s7 + $0x60] sm:$0xf]
    %v259 = vld [vmem:[%s7 + $0x64] sm:$0xf]
    %v260 = vld [vmem:[%s7 + $0x68] sm:$0xf]
    %v261 = vld [vmem:[%s7 + $0x6c] sm:$0xf]
    %v262 = vld [vmem:[%s7 + $0x70] sm:$0xf]
    %v263 = vld [vmem:[%s7 + $0x74] sm:$0xf]
    %v264 = vld [vmem:[%s7 + $0x78] sm:$0xf]
    %v265 = vld [vmem:[%s7 + $0x7c] sm:$0xf]
    %v266 = vld [vmem:[%s7 + $0x80] sm:$0xf]
    %v267 = vld [vmem:[%s7 + $0x84] sm:$0xf]
    %v268 = vld [vmem:[%s7 + $0x88] sm:$0xf]
    %v269 = vld [vmem:[%s7 + $0x8c] sm:$0xf]
    %v270 = vld [vmem:[%s7 + $0x90] sm:$0xf]
    %v271 = vld [vmem:[%s7 + $0x94] sm:$0xf]
    %v272 = vld [vmem:[%s7 + $0x98] sm:$0xf]
    %v273 = vld [vmem:[%s7 + $0x9c] sm:$0xf]
    %v274 = vld [vmem:[%s7 + $0xa0] sm:$0xf]
    %v275 = vld [vmem:[%s7 + $0xa4] sm:$0xf]
    %v276 = vld [vmem:[%s7 + $0xa8] sm:$0xf]
    %v277 = vld [vmem:[%s7 + $0xac] sm:$0xf]
    %v278 = vld [vmem:[%s7 + $0xb0] sm:$0xf]
    %v279 = vld [vmem:[%s7 + $0xb4] sm:$0xf]
    %v280 = vld [vmem:[%s7 + $0xb8] sm:$0xf]
    %v281 = vld [vmem:[%s7 + $0xbc] sm:$0xf]
    %v282 = vld [vmem:[%s7 + $0xc0] sm:$0xf]
    %v283 = vld [vmem:[%s7 + $0xc4] sm:$0xf]
    %v284 = vld [vmem:[%s7 + $0xc8] sm:$0xf]
    %v285 = vld [vmem:[%s7 + $0xcc] sm:$0xf]
    %v286 = vld [vmem:[%s7 + $0xd0] sm:$0xf]
    %v287 = vld [vmem:[%s7 + $0xd4] sm:$0xf]
    %v288 = vld [vmem:[%s7 + $0xd8] sm:$0xf]
    %v289 = vld [vmem:[%s7 + $0xdc] sm:$0xf]
    %v290 = vld [vmem:[%s7 + $0xe0] sm:$0xf]
    %v291 = vld [vmem:[%s7 + $0xe4] sm:$0xf]
    %v292 = vld [vmem:[%s7 + $0xe8] sm:$0xf]
    %v293 = vld [vmem:[%s7 + $0xec] sm:$0xf]
    %v294 = vld [vmem:[%s7 + $0xf0] sm:$0xf]
    %v295 = vld [vmem:[%s7 + $0xf4] sm:$0xf]
    %v296 = vld [vmem:[%s7 + $0xf8] sm:$0xf]
    %v297 = vld [vmem:[%s7 + $0xfc] sm:$0xf]
    %v298 = vld [vmem:[%s1] sm:$0xf]
    %300 = vst [vmem:[#allocation1] ss:$4 sm:$0xff] %v298
    %v301 = vld.sshfl [vmem:[#allocation1] sm:$0xff pattern:$0x73625140]
    %v302 = vld.sshfl [vmem:[#allocation1 + $0x8] sm:$0xff pattern:$0x73625140]
    %v305 = vsel %vm44, %v301, 0.0
    %v306 = vrot.slane %v305, 4
    %v307 = vadd.f32 %v305, %v306
    %v308 = vrot.slane %v307, 2
    %v309 = vadd.f32 %v307, %v308
    %v310 = vrot.slane %v309, 1
    %v311 = vadd.f32 %v309, %v310
    %v312 = vsel %vm44, %v302, 0.0
    %v313 = vrot.slane %v312, 4
    %v314 = vadd.f32 %v312, %v313
    %v315 = vrot.slane %v314, 2
    %v316 = vadd.f32 %v314, %v315
    %v317 = vrot.slane %v316, 1
    %v318 = vadd.f32 %v316, %v317
    %v319 = vmul.f32 %v311, 0.5
    %v320 = vmul.f32 %v318, 0.5
    %v323 = vrot.slane %v320, 6
    %v324 = vsel %vm44, %v319, %v323
    %v326 = vsub.f32 %v298, %v324
    %v327 = vmul.f32 %v326, %v326
    %329 = vst [vmem:[#allocation1] ss:$4 sm:$0xff] %v327
    %v330 = vld.sshfl [vmem:[#allocation1] sm:$0xff pattern:$0x73625140]
    %v331 = vld.sshfl [vmem:[#allocation1 + $0x8] sm:$0xff pattern:$0x73625140]
    %v334 = vsel %vm44, %v330, 0.0
    %v335 = vrot.slane %v334, 4
    %v336 = vadd.f32 %v334, %v335
    %v337 = vrot.slane %v336, 2
    %v338 = vadd.f32 %v336, %v337
    %v339 = vrot.slane %v338, 1
    %v340 = vadd.f32 %v338, %v339
    %v341 = vsel %vm44, %v331, 0.0
    %v342 = vrot.slane %v341, 4
    %v343 = vadd.f32 %v341, %v342
    %v344 = vrot.slane %v343, 2
    %v345 = vadd.f32 %v343, %v344
    %v346 = vrot.slane %v345, 1
    %v347 = vadd.f32 %v345, %v346
    %v348 = vmul.f32 %v340, 0.5
    %v349 = vmul.f32 %v347, 0.5
    %v350 = vld [vmem:[%s5 + $0x4] sm:$0x3]
    %v351 = vadd.f32 %v348, 1e-05
    %v352 = vadd.f32 %v349, 1e-05
    %v353 = vrsqrt.pop %v351
    %v354 = vmul.f32 %v353, %v351
    %v355 = vmul.f32 %v354, %v353
    %v356 = vmul.f32 0.5, %v355
    %v357 = vsub.f32 1.5, %v356
    %v358 = vmul.f32 %v353, %v357
    %vm359 = vweird.f32 %v351
    %vm360 = vweird.f32 %v353
    %vm361 = vmor %vm359, %vm360
    %v362 = vsel %vm361, %v353, %v358
    %v363 = vrsqrt.pop %v352
    %v364 = vmul.f32 %v363, %v352
    %v365 = vmul.f32 %v364, %v363
    %v366 = vmul.f32 0.5, %v365
    %v367 = vsub.f32 1.5, %v366
    %v368 = vmul.f32 %v363, %v367
    %vm369 = vweird.f32 %v352
    %vm370 = vweird.f32 %v363
    %vm371 = vmor %vm369, %vm370
    %v372 = vsel %vm371, %v363, %v368
    %v375 = vrot.slane %v372, 7
    %v376 = vsel %vm186, %v362, %v375
    %v378 = vmul.f32 %v350, %v376
    %v380 = vperm.slane %v378, 0
    %v381 = vperm.slane %v378, 1
    %v382 = vrot.slane %v381, 6
    %v383 = vsel %vm44, %v380, %v382
    %v385 = vmul.f32 %v326, %v383
    %v386 = vld [vmem:[%s6 + $0x4] sm:$0x3]
    %v388 = vperm.slane %v386, 0
    %v389 = vperm.slane %v386, 1
    %v390 = vrot.slane %v389, 6
    %v391 = vsel %vm44, %v388, %v390
    %v393 = vadd.f32 %v385, %v391
    %395 = vst [vmem:[#allocation1] ss:$4 sm:$0xff] %v393
    %v396 = vld.sshfl [vmem:[#allocation1] sm:$0xff pattern:$0x73625140]
    %v397 = vld.sshfl [vmem:[#allocation1 + $0x8] sm:$0xff pattern:$0x73625140]
    %v400 = vpack.c.bf16 %v396, %v396
    %v401 = vpack.c.bf16 %v397, %v397
    %v402 = vld [vmem:[%s7 + $0x100] sm:$0xf]
    %v403 = vld [vmem:[%s7 + $0x104] sm:$0xf]
    %v404 = vld [vmem:[%s7 + $0x108] sm:$0xf]
    %v405 = vld [vmem:[%s7 + $0x10c] sm:$0xf]
    %v406 = vld [vmem:[%s7 + $0x110] sm:$0xf]
    %v407 = vld [vmem:[%s7 + $0x114] sm:$0xf]
    %v408 = vld [vmem:[%s7 + $0x118] sm:$0xf]
    %v409 = vld [vmem:[%s7 + $0x11c] sm:$0xf]
    %v410 = vld [vmem:[%s7 + $0x120] sm:$0xf]
    %v411 = vld [vmem:[%s7 + $0x124] sm:$0xf]
    %v412 = vld [vmem:[%s7 + $0x128] sm:$0xf]
    %v413 = vld [vmem:[%s7 + $0x12c] sm:$0xf]
    %v414 = vld [vmem:[%s7 + $0x130] sm:$0xf]
    %v415 = vld [vmem:[%s7 + $0x134] sm:$0xf]
    %v416 = vld [vmem:[%s7 + $0x138] sm:$0xf]
    %v417 = vld [vmem:[%s7 + $0x13c] sm:$0xf]
    %v418 = vld [vmem:[%s7 + $0x140] sm:$0xf]
    %v419 = vld [vmem:[%s7 + $0x144] sm:$0xf]
    %v420 = vld [vmem:[%s7 + $0x148] sm:$0xf]
    %v421 = vld [vmem:[%s7 + $0x14c] sm:$0xf]
    %v422 = vld [vmem:[%s7 + $0x150] sm:$0xf]
    %v423 = vld [vmem:[%s7 + $0x154] sm:$0xf]
    %v424 = vld [vmem:[%s7 + $0x158] sm:$0xf]
    %v425 = vld [vmem:[%s7 + $0x15c] sm:$0xf]
    %v426 = vld [vmem:[%s7 + $0x160] sm:$0xf]
    %v427 = vld [vmem:[%s7 + $0x164] sm:$0xf]
    %v428 = vld [vmem:[%s7 + $0x168] sm:$0xf]
    %v429 = vld [vmem:[%s7 + $0x16c] sm:$0xf]
    %v430 = vld [vmem:[%s7 + $0x170] sm:$0xf]
    %v431 = vld [vmem:[%s7 + $0x174] sm:$0xf]
    %v432 = vld [vmem:[%s7 + $0x178] sm:$0xf]
    %v433 = vld [vmem:[%s7 + $0x17c] sm:$0xf]
    %v466 = vunpack.c.l.b16 %v402
    %v467 = vunpack.c.l.b16 %v403
    %v468 = vunpack.c.l.b16 %v404
    %v469 = vunpack.c.l.b16 %v405
    %v470 = vunpack.c.l.b16 %v406
    %v471 = vunpack.c.l.b16 %v407
    %v472 = vunpack.c.l.b16 %v408
    %v473 = vunpack.c.l.b16 %v409
    %v474 = vunpack.c.l.b16 %v410
    %v475 = vunpack.c.l.b16 %v411
    %v476 = vunpack.c.l.b16 %v412
    %v477 = vunpack.c.l.b16 %v413
    %v478 = vunpack.c.l.b16 %v414
    %v479 = vunpack.c.l.b16 %v415
    %v480 = vunpack.c.l.b16 %v416
    %v481 = vunpack.c.l.b16 %v417
    %v482 = vunpack.c.l.b16 %v418
    %v483 = vunpack.c.l.b16 %v419
    %v484 = vunpack.c.l.b16 %v420
    %v485 = vunpack.c.l.b16 %v421
    %v486 = vunpack.c.l.b16 %v422
    %v487 = vunpack.c.l.b16 %v423
    %v488 = vunpack.c.l.b16 %v424
    %v489 = vunpack.c.l.b16 %v425
    %v490 = vunpack.c.l.b16 %v426
    %v491 = vunpack.c.l.b16 %v427
    %v492 = vunpack.c.l.b16 %v428
    %v493 = vunpack.c.l.b16 %v429
    %v494 = vunpack.c.l.b16 %v430
    %v495 = vunpack.c.l.b16 %v431
    %v496 = vunpack.c.l.b16 %v432
    %v497 = vunpack.c.l.b16 %v433
    %v498 = vpack.c.b16 %v467, %v466
    %v499 = vpack.c.b16 %v469, %v468
    %v500 = vpack.c.b16 %v471, %v470
    %v501 = vpack.c.b16 %v473, %v472
    %v502 = vpack.c.b16 %v475, %v474
    %v503 = vpack.c.b16 %v477, %v476
    %v504 = vpack.c.b16 %v479, %v478
    %v505 = vpack.c.b16 %v481, %v480
    %v506 = vpack.c.b16 %v483, %v482
    %v507 = vpack.c.b16 %v485, %v484
    %v508 = vpack.c.b16 %v487, %v486
    %v509 = vpack.c.b16 %v489, %v488
    %v510 = vpack.c.b16 %v491, %v490
    %v511 = vpack.c.b16 %v493, %v492
    %v512 = vpack.c.b16 %v495, %v494
    %v513 = vpack.c.b16 %v497, %v496
    %530 = vmatpush.bf16.msra.mxu0 %v505
    %531 = vmatpush.bf16.msra.mxu0 %v504
    %532 = vmatpush.bf16.msra.mxu0 %v503
    %533 = vmatpush.bf16.msra.mxu0 %v502
    %534 = vmatpush.bf16.msra.mxu0 %v501
    %535 = vmatpush.bf16.msra.mxu0 %v500
    %536 = vmatpush.bf16.msra.mxu0 %v499
    %537 = vmatpush.bf16.msra.mxu0 %v498
    %538 = vmatmul.bf16.gmra.mxu0 %v400
    %v539 = vpop.f32.mrf.mxu0
    %v540 = vadd.f32 0.0, %v539
    %v541 = vpop.f32.mrf.mxu0
    %542 = vdwg.mxu0
    %543 = vmatpush.bf16.msra.mxu0 %v513
    %544 = vmatpush.bf16.msra.mxu0 %v512
    %545 = vmatpush.bf16.msra.mxu0 %v511
    %546 = vmatpush.bf16.msra.mxu0 %v510
    %547 = vmatpush.bf16.msra.mxu0 %v509
    %548 = vmatpush.bf16.msra.mxu0 %v508
    %549 = vmatpush.bf16.msra.mxu0 %v507
    %550 = vmatpush.bf16.msra.mxu0 %v506
    %551 = vmatmul.bf16.gmra.mxu0 %v401
    %v552 = vpop.f32.mrf.mxu0
    %v553 = vadd.f32 %v540, %v552
    %v554 = vpop.f32.mrf.mxu0
    %555 = vdwg.mxu0
    %v620 = vunpack.c.l.b16 %v234
    %v621 = vunpack.c.l.b16 %v235
    %v622 = vunpack.c.l.b16 %v236
    %v623 = vunpack.c.l.b16 %v237
    %v624 = vunpack.c.l.b16 %v238
    %v625 = vunpack.c.l.b16 %v239
    %v626 = vunpack.c.l.b16 %v240
    %v627 = vunpack.c.l.b16 %v241
    %v628 = vunpack.c.l.b16 %v242
    %v629 = vunpack.c.l.b16 %v243
    %v630 = vunpack.c.l.b16 %v244
    %v631 = vunpack.c.l.b16 %v245
    %v632 = vunpack.c.l.b16 %v246
    %v633 = vunpack.c.l.b16 %v247
    %v634 = vunpack.c.l.b16 %v248
    %v635 = vunpack.c.l.b16 %v249
    %v636 = vunpack.c.l.b16 %v250
    %v637 = vunpack.c.l.b16 %v251
    %v638 = vunpack.c.l.b16 %v252
    %v639 = vunpack.c.l.b16 %v253
    %v640 = vunpack.c.l.b16 %v254
    %v641 = vunpack.c.l.b16 %v255
    %v642 = vunpack.c.l.b16 %v256
    %v643 = vunpack.c.l.b16 %v257
    %v644 = vunpack.c.l.b16 %v258
    %v645 = vunpack.c.l.b16 %v259
    %v646 = vunpack.c.l.b16 %v260
    %v647 = vunpack.c.l.b16 %v261
    %v648 = vunpack.c.l.b16 %v262
    %v649 = vunpack.c.l.b16 %v263
    %v650 = vunpack.c.l.b16 %v264
    %v651 = vunpack.c.l.b16 %v265
    %v652 = vunpack.c.l.b16 %v266
    %v653 = vunpack.c.l.b16 %v267
    %v654 = vunpack.c.l.b16 %v268
    %v655 = vunpack.c.l.b16 %v269
    %v656 = vunpack.c.l.b16 %v270
    %v657 = vunpack.c.l.b16 %v271
    %v658 = vunpack.c.l.b16 %v272
    %v659 = vunpack.c.l.b16 %v273
    %v660 = vunpack.c.l.b16 %v274
    %v661 = vunpack.c.l.b16 %v275
    %v662 = vunpack.c.l.b16 %v276
    %v663 = vunpack.c.l.b16 %v277
    %v664 = vunpack.c.l.b16 %v278
    %v665 = vunpack.c.l.b16 %v279
    %v666 = vunpack.c.l.b16 %v280
    %v667 = vunpack.c.l.b16 %v281
    %v668 = vunpack.c.l.b16 %v282
    %v669 = vunpack.c.l.b16 %v283
    %v670 = vunpack.c.l.b16 %v284
    %v671 = vunpack.c.l.b16 %v285
    %v672 = vunpack.c.l.b16 %v286
    %v673 = vunpack.c.l.b16 %v287
    %v674 = vunpack.c.l.b16 %v288
    %v675 = vunpack.c.l.b16 %v289
    %v676 = vunpack.c.l.b16 %v290
    %v677 = vunpack.c.l.b16 %v291
    %v678 = vunpack.c.l.b16 %v292
    %v679 = vunpack.c.l.b16 %v293
    %v680 = vunpack.c.l.b16 %v294
    %v681 = vunpack.c.l.b16 %v295
    %v682 = vunpack.c.l.b16 %v296
    %v683 = vunpack.c.l.b16 %v297
    %v684 = vpack.c.b16 %v621, %v620
    %v685 = vpack.c.b16 %v623, %v622
    %v686 = vpack.c.b16 %v625, %v624
    %v687 = vpack.c.b16 %v627, %v626
    %v688 = vpack.c.b16 %v629, %v628
    %v689 = vpack.c.b16 %v631, %v630
    %v690 = vpack.c.b16 %v633, %v632
    %v691 = vpack.c.b16 %v635, %v634
    %v692 = vpack.c.b16 %v637, %v636
    %v693 = vpack.c.b16 %v639, %v638
    %v694 = vpack.c.b16 %v641, %v640
    %v695 = vpack.c.b16 %v643, %v642
    %v696 = vpack.c.b16 %v645, %v644
    %v697 = vpack.c.b16 %v647, %v646
    %v698 = vpack.c.b16 %v649, %v648
    %v699 = vpack.c.b16 %v651, %v650
    %v700 = vpack.c.b16 %v653, %v652
    %v701 = vpack.c.b16 %v655, %v654
    %v702 = vpack.c.b16 %v657, %v656
    %v703 = vpack.c.b16 %v659, %v658
    %v704 = vpack.c.b16 %v661, %v660
    %v705 = vpack.c.b16 %v663, %v662
    %v706 = vpack.c.b16 %v665, %v664
    %v707 = vpack.c.b16 %v667, %v666
    %v708 = vpack.c.b16 %v669, %v668
    %v709 = vpack.c.b16 %v671, %v670
    %v710 = vpack.c.b16 %v673, %v672
    %v711 = vpack.c.b16 %v675, %v674
    %v712 = vpack.c.b16 %v677, %v676
    %v713 = vpack.c.b16 %v679, %v678
    %v714 = vpack.c.b16 %v681, %v680
    %v715 = vpack.c.b16 %v683, %v682
    %748 = vmatpush.bf16.msra.mxu0 %v691
    %749 = vmatpush.bf16.msra.mxu0 %v690
    %750 = vmatpush.bf16.msra.mxu0 %v689
    %751 = vmatpush.bf16.msra.mxu0 %v688
    %752 = vmatpush.bf16.msra.mxu0 %v687
    %753 = vmatpush.bf16.msra.mxu0 %v686
    %754 = vmatpush.bf16.msra.mxu0 %v685
    %755 = vmatpush.bf16.msra.mxu0 %v684
    %756 = vmatmul.bf16.gmra.mxu0 %v230
    %v757 = vpop.f32.mrf.mxu0
    %v758 = vadd.f32 %v553, %v757
    %v759 = vpop.f32.mrf.mxu0
    %760 = vdwg.mxu0
    %761 = vmatpush.bf16.msra.mxu0 %v699
    %762 = vmatpush.bf16.msra.mxu0 %v698
    %763 = vmatpush.bf16.msra.mxu0 %v697
    %764 = vmatpush.bf16.msra.mxu0 %v696
    %765 = vmatpush.bf16.msra.mxu0 %v695
    %766 = vmatpush.bf16.msra.mxu0 %v694
    %767 = vmatpush.bf16.msra.mxu0 %v693
    %768 = vmatpush.bf16.msra.mxu0 %v692
    %769 = vmatmul.bf16.gmra.mxu0 %v231
    %v770 = vpop.f32.mrf.mxu0
    %v771 = vadd.f32 %v758, %v770
    %v772 = vpop.f32.mrf.mxu0
    %773 = vdwg.mxu0
    %774 = vmatpush.bf16.msra.mxu0 %v707
    %775 = vmatpush.bf16.msra.mxu0 %v706
    %776 = vmatpush.bf16.msra.mxu0 %v705
    %777 = vmatpush.bf16.msra.mxu0 %v704
    %778 = vmatpush.bf16.msra.mxu0 %v703
    %779 = vmatpush.bf16.msra.mxu0 %v702
    %780 = vmatpush.bf16.msra.mxu0 %v701
    %781 = vmatpush.bf16.msra.mxu0 %v700
    %782 = vmatmul.bf16.gmra.mxu0 %v232
    %v783 = vpop.f32.mrf.mxu0
    %v784 = vadd.f32 %v771, %v783
    %v785 = vpop.f32.mrf.mxu0
    %786 = vdwg.mxu0
    %787 = vmatpush.bf16.msra.mxu0 %v715
    %788 = vmatpush.bf16.msra.mxu0 %v714
    %789 = vmatpush.bf16.msra.mxu0 %v713
    %790 = vmatpush.bf16.msra.mxu0 %v712
    %791 = vmatpush.bf16.msra.mxu0 %v711
    %792 = vmatpush.bf16.msra.mxu0 %v710
    %793 = vmatpush.bf16.msra.mxu0 %v709
    %794 = vmatpush.bf16.msra.mxu0 %v708
    %795 = vmatmul.bf16.gmra.mxu0 %v233
    %v796 = vpop.f32.mrf.mxu0
    %v797 = vadd.f32 %v784, %v796
    %v798 = vpop.f32.mrf.mxu0
    %799 = vdwg.mxu0
    %v800 = vld [vmem:[%s2] sm:$0xff]
    %802 = vst [vmem:[#allocation1] ss:$4 sm:$0xff] %v800
    %v803 = vld.sshfl [vmem:[#allocation1] sm:$0xff pattern:$0x73625140]
    %v804 = vld.sshfl [vmem:[#allocation1 + $0x8] sm:$0xff pattern:$0x73625140]
    %v805 = vld.sshfl [vmem:[#allocation1 + $0x10] sm:$0xff pattern:$0x73625140]
    %v806 = vld.sshfl [vmem:[#allocation1 + $0x18] sm:$0xff pattern:$0x73625140]
    %v811 = vsel %vm44, %v803, 0.0
    %v812 = vrot.slane %v811, 4
    %v813 = vadd.f32 %v811, %v812
    %v814 = vrot.slane %v813, 2
    %v815 = vadd.f32 %v813, %v814
    %v816 = vrot.slane %v815, 1
    %v817 = vadd.f32 %v815, %v816
    %v818 = vsel %vm44, %v804, 0.0
    %v819 = vrot.slane %v818, 4
    %v820 = vadd.f32 %v818, %v819
    %v821 = vrot.slane %v820, 2
    %v822 = vadd.f32 %v820, %v821
    %v823 = vrot.slane %v822, 1
    %v824 = vadd.f32 %v822, %v823
    %v825 = vsel %vm44, %v805, 0.0
    %v826 = vrot.slane %v825, 4
    %v827 = vadd.f32 %v825, %v826
    %v828 = vrot.slane %v827, 2
    %v829 = vadd.f32 %v827, %v828
    %v830 = vrot.slane %v829, 1
    %v831 = vadd.f32 %v829, %v830
    %v832 = vsel %vm44, %v806, 0.0
    %v833 = vrot.slane %v832, 4
    %v834 = vadd.f32 %v832, %v833
    %v835 = vrot.slane %v834, 2
    %v836 = vadd.f32 %v834, %v835
    %v837 = vrot.slane %v836, 1
    %v838 = vadd.f32 %v836, %v837
    %v839 = vmul.f32 %v817, 0.5
    %v840 = vmul.f32 %v824, 0.5
    %v841 = vmul.f32 %v831, 0.5
    %v842 = vmul.f32 %v838, 0.5
    %v847 = vrot.slane %v840, 6
    %v848 = vrot.slane %v841, 4
    %v849 = vrot.slane %v842, 2
    %v850 = vsel %vm44, %v839, %v847
    %v851 = vsel %vm85, %v848, %v849
    %v852 = vsel %vm87, %v850, %v851
    %v854 = vsub.f32 %v800, %v852
    %v855 = vmul.f32 %v854, %v854
    %857 = vst [vmem:[#allocation1] ss:$4 sm:$0xff] %v855
    %v858 = vld.sshfl [vmem:[#allocation1] sm:$0xff pattern:$0x73625140]
    %v859 = vld.sshfl [vmem:[#allocation1 + $0x8] sm:$0xff pattern:$0x73625140]
    %v860 = vld.sshfl [vmem:[#allocation1 + $0x10] sm:$0xff pattern:$0x73625140]
    %v861 = vld.sshfl [vmem:[#allocation1 + $0x18] sm:$0xff pattern:$0x73625140]
    %v866 = vsel %vm44, %v858, 0.0
    %v867 = vrot.slane %v866, 4
    %v868 = vadd.f32 %v866, %v867
    %v869 = vrot.slane %v868, 2
    %v870 = vadd.f32 %v868, %v869
    %v871 = vrot.slane %v870, 1
    %v872 = vadd.f32 %v870, %v871
    %v873 = vsel %vm44, %v859, 0.0
    %v874 = vrot.slane %v873, 4
    %v875 = vadd.f32 %v873, %v874
    %v876 = vrot.slane %v875, 2
    %v877 = vadd.f32 %v875, %v876
    %v878 = vrot.slane %v877, 1
    %v879 = vadd.f32 %v877, %v878
    %v880 = vsel %vm44, %v860, 0.0
    %v881 = vrot.slane %v880, 4
    %v882 = vadd.f32 %v880, %v881
    %v883 = vrot.slane %v882, 2
    %v884 = vadd.f32 %v882, %v883
    %v885 = vrot.slane %v884, 1
    %v886 = vadd.f32 %v884, %v885
    %v887 = vsel %vm44, %v861, 0.0
    %v888 = vrot.slane %v887, 4
    %v889 = vadd.f32 %v887, %v888
    %v890 = vrot.slane %v889, 2
    %v891 = vadd.f32 %v889, %v890
    %v892 = vrot.slane %v891, 1
    %v893 = vadd.f32 %v891, %v892
    %v894 = vmul.f32 %v872, 0.5
    %v895 = vmul.f32 %v879, 0.5
    %v896 = vmul.f32 %v886, 0.5
    %v897 = vmul.f32 %v893, 0.5
    %v898 = vld [vmem:[%s5 + $0x6] sm:$0xf]
    %v899 = vadd.f32 %v894, 1e-05
    %v900 = vadd.f32 %v895, 1e-05
    %v901 = vadd.f32 %v896, 1e-05
    %v902 = vadd.f32 %v897, 1e-05
    %v903 = vrsqrt.pop %v899
    %v904 = vmul.f32 %v903, %v899
    %v905 = vmul.f32 %v904, %v903
    %v906 = vmul.f32 0.5, %v905
    %v907 = vsub.f32 1.5, %v906
    %v908 = vmul.f32 %v903, %v907
    %vm909 = vweird.f32 %v899
    %vm910 = vweird.f32 %v903
    %vm911 = vmor %vm909, %vm910
    %v912 = vsel %vm911, %v903, %v908
    %v913 = vrsqrt.pop %v900
    %v914 = vmul.f32 %v913, %v900
    %v915 = vmul.f32 %v914, %v913
    %v916 = vmul.f32 0.5, %v915
    %v917 = vsub.f32 1.5, %v916
    %v918 = vmul.f32 %v913, %v917
    %vm919 = vweird.f32 %v900
    %vm920 = vweird.f32 %v913
    %vm921 = vmor %vm919, %vm920
    %v922 = vsel %vm921, %v913, %v918
    %v923 = vrsqrt.pop %v901
    %v924 = vmul.f32 %v923, %v901
    %v925 = vmul.f32 %v924, %v923
    %v926 = vmul.f32 0.5, %v925
    %v927 = vsub.f32 1.5, %v926
    %v928 = vmul.f32 %v923, %v927
    %vm929 = vweird.f32 %v901
    %vm930 = vweird.f32 %v923
    %vm931 = vmor %vm929, %vm930
    %v932 = vsel %vm931, %v923, %v928
    %v933 = vrsqrt.pop %v902
    %v934 = vmul.f32 %v933, %v902
    %v935 = vmul.f32 %v934, %v933
    %v936 = vmul.f32 0.5, %v935
    %v937 = vsub.f32 1.5, %v936
    %v938 = vmul.f32 %v933, %v937
    %vm939 = vweird.f32 %v902
    %vm940 = vweird.f32 %v933
    %vm941 = vmor %vm939, %vm940
    %v942 = vsel %vm941, %v933, %v938
    %v947 = vrot.slane %v922, 7
    %v948 = vrot.slane %v932, 6
    %v949 = vrot.slane %v942, 5
    %v950 = vsel %vm186, %v912, %v947
    %v951 = vsel %vm188, %v948, %v949
    %v952 = vsel %vm44, %v950, %v951
    %v954 = vmul.f32 %v898, %v952
    %v956 = vperm.slane %v954, 0
    %v957 = vperm.slane %v954, 1
    %v958 = vperm.slane %v954, 2
    %v959 = vperm.slane %v954, 3
    %v960 = vrot.slane %v957, 6
    %v961 = vrot.slane %v958, 4
    %v962 = vrot.slane %v959, 2
    %v963 = vsel %vm44, %v956, %v960
    %v964 = vsel %vm85, %v961, %v962
    %v965 = vsel %vm87, %v963, %v964
    %v967 = vmul.f32 %v854, %v965
    %v968 = vld [vmem:[%s6 + $0x6] sm:$0xf]
    %v970 = vperm.slane %v968, 0
    %v971 = vperm.slane %v968, 1
    %v972 = vperm.slane %v968, 2
    %v973 = vperm.slane %v968, 3
    %v974 = vrot.slane %v971, 6
    %v975 = vrot.slane %v972, 4
    %v976 = vrot.slane %v973, 2
    %v977 = vsel %vm44, %v970, %v974
    %v978 = vsel %vm85, %v975, %v976
    %v979 = vsel %vm87, %v977, %v978
    %v981 = vadd.f32 %v967, %v979
    %983 = vst [vmem:[#allocation1] ss:$4 sm:$0xff] %v981
    %v984 = vld.sshfl [vmem:[#allocation1] sm:$0xff pattern:$0x73625140]
    %v985 = vld.sshfl [vmem:[#allocation1 + $0x8] sm:$0xff pattern:$0x73625140]
    %v986 = vld.sshfl [vmem:[#allocation1 + $0x10] sm:$0xff pattern:$0x73625140]
    %v987 = vld.sshfl [vmem:[#allocation1 + $0x18] sm:$0xff pattern:$0x73625140]
    %v992 = vpack.c.bf16 %v984, %v984
    %v993 = vpack.c.bf16 %v985, %v985
    %v994 = vpack.c.bf16 %v986, %v986
    %v995 = vpack.c.bf16 %v987, %v987
    %v996 = vld [vmem:[%s7 + $0x180] sm:$0xf]
    %v997 = vld [vmem:[%s7 + $0x184] sm:$0xf]
    %v998 = vld [vmem:[%s7 + $0x188] sm:$0xf]
    %v999 = vld [vmem:[%s7 + $0x18c] sm:$0xf]
    %v1000 = vld [vmem:[%s7 + $0x190] sm:$0xf]
    %v1001 = vld [vmem:[%s7 + $0x194] sm:$0xf]
    %v1002 = vld [vmem:[%s7 + $0x198] sm:$0xf]
    %v1003 = vld [vmem:[%s7 + $0x19c] sm:$0xf]
    %v1004 = vld [vmem:[%s7 + $0x1a0] sm:$0xf]
    %v1005 = vld [vmem:[%s7 + $0x1a4] sm:$0xf]
    %v1006 = vld [vmem:[%s7 + $0x1a8] sm:$0xf]
    %v1007 = vld [vmem:[%s7 + $0x1ac] sm:$0xf]
    %v1008 = vld [vmem:[%s7 + $0x1b0] sm:$0xf]
    %v1009 = vld [vmem:[%s7 + $0x1b4] sm:$0xf]
    %v1010 = vld [vmem:[%s7 + $0x1b8] sm:$0xf]
    %v1011 = vld [vmem:[%s7 + $0x1bc] sm:$0xf]
    %v1012 = vld [vmem:[%s7 + $0x1c0] sm:$0xf]
    %v1013 = vld [vmem:[%s7 + $0x1c4] sm:$0xf]
    %v1014 = vld [vmem:[%s7 + $0x1c8] sm:$0xf]
    %v1015 = vld [vmem:[%s7 + $0x1cc] sm:$0xf]
    %v1016 = vld [vmem:[%s7 + $0x1d0] sm:$0xf]
    %v1017 = vld [vmem:[%s7 + $0x1d4] sm:$0xf]
    %v1018 = vld [vmem:[%s7 + $0x1d8] sm:$0xf]
    %v1019 = vld [vmem:[%s7 + $0x1dc] sm:$0xf]
    %v1020 = vld [vmem:[%s7 + $0x1e0] sm:$0xf]
    %v1021 = vld [vmem:[%s7 + $0x1e4] sm:$0xf]
    %v1022 = vld [vmem:[%s7 + $0x1e8] sm:$0xf]
    %v1023 = vld [vmem:[%s7 + $0x1ec] sm:$0xf]
    %v1024 = vld [vmem:[%s7 + $0x1f0] sm:$0xf]
    %v1025 = vld [vmem:[%s7 + $0x1f4] sm:$0xf]
    %v1026 = vld [vmem:[%s7 + $0x1f8] sm:$0xf]
    %v1027 = vld [vmem:[%s7 + $0x1fc] sm:$0xf]
    %v1028 = vld [vmem:[%s7 + $0x200] sm:$0xf]
    %v1029 = vld [vmem:[%s7 + $0x204] sm:$0xf]
    %v1030 = vld [vmem:[%s7 + $0x208] sm:$0xf]
    %v1031 = vld [vmem:[%s7 + $0x20c] sm:$0xf]
    %v1032 = vld [vmem:[%s7 + $0x210] sm:$0xf]
    %v1033 = vld [vmem:[%s7 + $0x214] sm:$0xf]
    %v1034 = vld [vmem:[%s7 + $0x218] sm:$0xf]
    %v1035 = vld [vmem:[%s7 + $0x21c] sm:$0xf]
    %v1036 = vld [vmem:[%s7 + $0x220] sm:$0xf]
    %v1037 = vld [vmem:[%s7 + $0x224] sm:$0xf]
    %v1038 = vld [vmem:[%s7 + $0x228] sm:$0xf]
    %v1039 = vld [vmem:[%s7 + $0x22c] sm:$0xf]
    %v1040 = vld [vmem:[%s7 + $0x230] sm:$0xf]
    %v1041 = vld [vmem:[%s7 + $0x234] sm:$0xf]
    %v1042 = vld [vmem:[%s7 + $0x238] sm:$0xf]
    %v1043 = vld [vmem:[%s7 + $0x23c] sm:$0xf]
    %v1044 = vld [vmem:[%s7 + $0x240] sm:$0xf]
    %v1045 = vld [vmem:[%s7 + $0x244] sm:$0xf]
    %v1046 = vld [vmem:[%s7 + $0x248] sm:$0xf]
    %v1047 = vld [vmem:[%s7 + $0x24c] sm:$0xf]
    %v1048 = vld [vmem:[%s7 + $0x250] sm:$0xf]
    %v1049 = vld [vmem:[%s7 + $0x254] sm:$0xf]
    %v1050 = vld [vmem:[%s7 + $0x258] sm:$0xf]
    %v1051 = vld [vmem:[%s7 + $0x25c] sm:$0xf]
    %v1052 = vld [vmem:[%s7 + $0x260] sm:$0xf]
    %v1053 = vld [vmem:[%s7 + $0x264] sm:$0xf]
    %v1054 = vld [vmem:[%s7 + $0x268] sm:$0xf]
    %v1055 = vld [vmem:[%s7 + $0x26c] sm:$0xf]
    %v1056 = vld [vmem:[%s7 + $0x270] sm:$0xf]
    %v1057 = vld [vmem:[%s7 + $0x274] sm:$0xf]
    %v1058 = vld [vmem:[%s7 + $0x278] sm:$0xf]
    %v1059 = vld [vmem:[%s7 + $0x27c] sm:$0xf]
    %v1124 = vunpack.c.l.b16 %v996
    %v1125 = vunpack.c.l.b16 %v997
    %v1126 = vunpack.c.l.b16 %v998
    %v1127 = vunpack.c.l.b16 %v999
    %v1128 = vunpack.c.l.b16 %v1000
    %v1129 = vunpack.c.l.b16 %v1001
    %v1130 = vunpack.c.l.b16 %v1002
    %v1131 = vunpack.c.l.b16 %v1003
    %v1132 = vunpack.c.l.b16 %v1004
    %v1133 = vunpack.c.l.b16 %v1005
    %v1134 = vunpack.c.l.b16 %v1006
    %v1135 = vunpack.c.l.b16 %v1007
    %v1136 = vunpack.c.l.b16 %v1008
    %v1137 = vunpack.c.l.b16 %v1009
    %v1138 = vunpack.c.l.b16 %v1010
    %v1139 = vunpack.c.l.b16 %v1011
    %v1140 = vunpack.c.l.b16 %v1012
    %v1141 = vunpack.c.l.b16 %v1013
    %v1142 = vunpack.c.l.b16 %v1014
    %v1143 = vunpack.c.l.b16 %v1015
    %v1144 = vunpack.c.l.b16 %v1016
    %v1145 = vunpack.c.l.b16 %v1017
    %v1146 = vunpack.c.l.b16 %v1018
    %v1147 = vunpack.c.l.b16 %v1019
    %v1148 = vunpack.c.l.b16 %v1020
    %v1149 = vunpack.c.l.b16 %v1021
    %v1150 = vunpack.c.l.b16 %v1022
    %v1151 = vunpack.c.l.b16 %v1023
    %v1152 = vunpack.c.l.b16 %v1024
    %v1153 = vunpack.c.l.b16 %v1025
    %v1154 = vunpack.c.l.b16 %v1026
    %v1155 = vunpack.c.l.b16 %v1027
    %v1156 = vunpack.c.l.b16 %v1028
    %v1157 = vunpack.c.l.b16 %v1029
    %v1158 = vunpack.c.l.b16 %v1030
    %v1159 = vunpack.c.l.b16 %v1031
    %v1160 = vunpack.c.l.b16 %v1032
    %v1161 = vunpack.c.l.b16 %v1033
    %v1162 = vunpack.c.l.b16 %v1034
    %v1163 = vunpack.c.l.b16 %v1035
    %v1164 = vunpack.c.l.b16 %v1036
    %v1165 = vunpack.c.l.b16 %v1037
    %v1166 = vunpack.c.l.b16 %v1038
    %v1167 = vunpack.c.l.b16 %v1039
    %v1168 = vunpack.c.l.b16 %v1040
    %v1169 = vunpack.c.l.b16 %v1041
    %v1170 = vunpack.c.l.b16 %v1042
    %v1171 = vunpack.c.l.b16 %v1043
    %v1172 = vunpack.c.l.b16 %v1044
    %v1173 = vunpack.c.l.b16 %v1045
    %v1174 = vunpack.c.l.b16 %v1046
    %v1175 = vunpack.c.l.b16 %v1047
    %v1176 = vunpack.c.l.b16 %v1048
    %v1177 = vunpack.c.l.b16 %v1049
    %v1178 = vunpack.c.l.b16 %v1050
    %v1179 = vunpack.c.l.b16 %v1051
    %v1180 = vunpack.c.l.b16 %v1052
    %v1181 = vunpack.c.l.b16 %v1053
    %v1182 = vunpack.c.l.b16 %v1054
    %v1183 = vunpack.c.l.b16 %v1055
    %v1184 = vunpack.c.l.b16 %v1056
    %v1185 = vunpack.c.l.b16 %v1057
    %v1186 = vunpack.c.l.b16 %v1058
    %v1187 = vunpack.c.l.b16 %v1059
    %v1188 = vpack.c.b16 %v1125, %v1124
    %v1189 = vpack.c.b16 %v1127, %v1126
    %v1190 = vpack.c.b16 %v1129, %v1128
    %v1191 = vpack.c.b16 %v1131, %v1130
    %v1192 = vpack.c.b16 %v1133, %v1132
    %v1193 = vpack.c.b16 %v1135, %v1134
    %v1194 = vpack.c.b16 %v1137, %v1136
    %v1195 = vpack.c.b16 %v1139, %v1138
    %v1196 = vpack.c.b16 %v1141, %v1140
    %v1197 = vpack.c.b16 %v1143, %v1142
    %v1198 = vpack.c.b16 %v1145, %v1144
    %v1199 = vpack.c.b16 %v1147, %v1146
    %v1200 = vpack.c.b16 %v1149, %v1148
    %v1201 = vpack.c.b16 %v1151, %v1150
    %v1202 = vpack.c.b16 %v1153, %v1152
    %v1203 = vpack.c.b16 %v1155, %v1154
    %v1204 = vpack.c.b16 %v1157, %v1156
    %v1205 = vpack.c.b16 %v1159, %v1158
    %v1206 = vpack.c.b16 %v1161, %v1160
    %v1207 = vpack.c.b16 %v1163, %v1162
    %v1208 = vpack.c.b16 %v1165, %v1164
    %v1209 = vpack.c.b16 %v1167, %v1166
    %v1210 = vpack.c.b16 %v1169, %v1168
    %v1211 = vpack.c.b16 %v1171, %v1170
    %v1212 = vpack.c.b16 %v1173, %v1172
    %v1213 = vpack.c.b16 %v1175, %v1174
    %v1214 = vpack.c.b16 %v1177, %v1176
    %v1215 = vpack.c.b16 %v1179, %v1178
    %v1216 = vpack.c.b16 %v1181, %v1180
    %v1217 = vpack.c.b16 %v1183, %v1182
    %v1218 = vpack.c.b16 %v1185, %v1184
    %v1219 = vpack.c.b16 %v1187, %v1186
    %1252 = vmatpush.bf16.msra.mxu0 %v1195
    %1253 = vmatpush.bf16.msra.mxu0 %v1194
    %1254 = vmatpush.bf16.msra.mxu0 %v1193
    %1255 = vmatpush.bf16.msra.mxu0 %v1192
    %1256 = vmatpush.bf16.msra.mxu0 %v1191
    %1257 = vmatpush.bf16.msra.mxu0 %v1190
    %1258 = vmatpush.bf16.msra.mxu0 %v1189
    %1259 = vmatpush.bf16.msra.mxu0 %v1188
    %1260 = vmatmul.bf16.gmra.mxu0 %v992
    %v1261 = vpop.f32.mrf.mxu0
    %v1262 = vadd.f32 0.0, %v1261
    %v1263 = vpop.f32.mrf.mxu0
    %1264 = vdwg.mxu0
    %1265 = vmatpush.bf16.msra.mxu0 %v1203
    %1266 = vmatpush.bf16.msra.mxu0 %v1202
    %1267 = vmatpush.bf16.msra.mxu0 %v1201
    %1268 = vmatpush.bf16.msra.mxu0 %v1200
    %1269 = vmatpush.bf16.msra.mxu0 %v1199
    %1270 = vmatpush.bf16.msra.mxu0 %v1198
    %1271 = vmatpush.bf16.msra.mxu0 %v1197
    %1272 = vmatpush.bf16.msra.mxu0 %v1196
    %1273 = vmatmul.bf16.gmra.mxu0 %v993
    %v1274 = vpop.f32.mrf.mxu0
    %v1275 = vadd.f32 %v1262, %v1274
    %v1276 = vpop.f32.mrf.mxu0
    %1277 = vdwg.mxu0
    %1278 = vmatpush.bf16.msra.mxu0 %v1211
    %1279 = vmatpush.bf16.msra.mxu0 %v1210
    %1280 = vmatpush.bf16.msra.mxu0 %v1209
    %1281 = vmatpush.bf16.msra.mxu0 %v1208
    %1282 = vmatpush.bf16.msra.mxu0 %v1207
    %1283 = vmatpush.bf16.msra.mxu0 %v1206
    %1284 = vmatpush.bf16.msra.mxu0 %v1205
    %1285 = vmatpush.bf16.msra.mxu0 %v1204
    %1286 = vmatmul.bf16.gmra.mxu0 %v994
    %v1287 = vpop.f32.mrf.mxu0
    %v1288 = vadd.f32 %v1275, %v1287
    %v1289 = vpop.f32.mrf.mxu0
    %1290 = vdwg.mxu0
    %1291 = vmatpush.bf16.msra.mxu0 %v1219
    %1292 = vmatpush.bf16.msra.mxu0 %v1218
    %1293 = vmatpush.bf16.msra.mxu0 %v1217
    %1294 = vmatpush.bf16.msra.mxu0 %v1216
    %1295 = vmatpush.bf16.msra.mxu0 %v1215
    %1296 = vmatpush.bf16.msra.mxu0 %v1214
    %1297 = vmatpush.bf16.msra.mxu0 %v1213
    %1298 = vmatpush.bf16.msra.mxu0 %v1212
    %1299 = vmatmul.bf16.gmra.mxu0 %v995
    %v1300 = vpop.f32.mrf.mxu0
    %v1301 = vadd.f32 %v1288, %v1300
    %v1302 = vpop.f32.mrf.mxu0
    %1303 = vdwg.mxu0
    %v1304 = vadd.f32 %v797, %v1301
    %v1305 = vld [vmem:[%s3] sm:$0xff]
    %1307 = vst [vmem:[#allocation1] ss:$4 sm:$0xff] %v1305
    %v1308 = vld.sshfl [vmem:[#allocation1] sm:$0xff pattern:$0x73625140]
    %v1309 = vld.sshfl [vmem:[#allocation1 + $0x8] sm:$0xff pattern:$0x73625140]
    %v1310 = vld.sshfl [vmem:[#allocation1 + $0x10] sm:$0xff pattern:$0x73625140]
    %v1311 = vld.sshfl [vmem:[#allocation1 + $0x18] sm:$0xff pattern:$0x73625140]
    %v1316 = vsel %vm44, %v1308, 0.0
    %v1317 = vrot.slane %v1316, 4
    %v1318 = vadd.f32 %v1316, %v1317
    %v1319 = vrot.slane %v1318, 2
    %v1320 = vadd.f32 %v1318, %v1319
    %v1321 = vrot.slane %v1320, 1
    %v1322 = vadd.f32 %v1320, %v1321
    %v1323 = vsel %vm44, %v1309, 0.0
    %v1324 = vrot.slane %v1323, 4
    %v1325 = vadd.f32 %v1323, %v1324
    %v1326 = vrot.slane %v1325, 2
    %v1327 = vadd.f32 %v1325, %v1326
    %v1328 = vrot.slane %v1327, 1
    %v1329 = vadd.f32 %v1327, %v1328
    %v1330 = vsel %vm44, %v1310, 0.0
    %v1331 = vrot.slane %v1330, 4
    %v1332 = vadd.f32 %v1330, %v1331
    %v1333 = vrot.slane %v1332, 2
    %v1334 = vadd.f32 %v1332, %v1333
    %v1335 = vrot.slane %v1334, 1
    %v1336 = vadd.f32 %v1334, %v1335
    %v1337 = vsel %vm44, %v1311, 0.0
    %v1338 = vrot.slane %v1337, 4
    %v1339 = vadd.f32 %v1337, %v1338
    %v1340 = vrot.slane %v1339, 2
    %v1341 = vadd.f32 %v1339, %v1340
    %v1342 = vrot.slane %v1341, 1
    %v1343 = vadd.f32 %v1341, %v1342
    %v1344 = vmul.f32 %v1322, 0.5
    %v1345 = vmul.f32 %v1329, 0.5
    %v1346 = vmul.f32 %v1336, 0.5
    %v1347 = vmul.f32 %v1343, 0.5
    %v1352 = vrot.slane %v1345, 6
    %v1353 = vrot.slane %v1346, 4
    %v1354 = vrot.slane %v1347, 2
    %v1355 = vsel %vm44, %v1344, %v1352
    %v1356 = vsel %vm85, %v1353, %v1354
    %v1357 = vsel %vm87, %v1355, %v1356
    %v1359 = vsub.f32 %v1305, %v1357
    %v1360 = vmul.f32 %v1359, %v1359
    %1362 = vst [vmem:[#allocation1] ss:$4 sm:$0xff] %v1360
    %v1363 = vld.sshfl [vmem:[#allocation1] sm:$0xff pattern:$0x73625140]
    %v1364 = vld.sshfl [vmem:[#allocation1 + $0x8] sm:$0xff pattern:$0x73625140]
    %v1365 = vld.sshfl [vmem:[#allocation1 + $0x10] sm:$0xff pattern:$0x73625140]
    %v1366 = vld.sshfl [vmem:[#allocation1 + $0x18] sm:$0xff pattern:$0x73625140]
    %v1371 = vsel %vm44, %v1363, 0.0
    %v1372 = vrot.slane %v1371, 4
    %v1373 = vadd.f32 %v1371, %v1372
    %v1374 = vrot.slane %v1373, 2
    %v1375 = vadd.f32 %v1373, %v1374
    %v1376 = vrot.slane %v1375, 1
    %v1377 = vadd.f32 %v1375, %v1376
    %v1378 = vsel %vm44, %v1364, 0.0
    %v1379 = vrot.slane %v1378, 4
    %v1380 = vadd.f32 %v1378, %v1379
    %v1381 = vrot.slane %v1380, 2
    %v1382 = vadd.f32 %v1380, %v1381
    %v1383 = vrot.slane %v1382, 1
    %v1384 = vadd.f32 %v1382, %v1383
    %v1385 = vsel %vm44, %v1365, 0.0
    %v1386 = vrot.slane %v1385, 4
    %v1387 = vadd.f32 %v1385, %v1386
    %v1388 = vrot.slane %v1387, 2
    %v1389 = vadd.f32 %v1387, %v1388
    %v1390 = vrot.slane %v1389, 1
    %v1391 = vadd.f32 %v1389, %v1390
    %v1392 = vsel %vm44, %v1366, 0.0
    %v1393 = vrot.slane %v1392, 4
    %v1394 = vadd.f32 %v1392, %v1393
    %v1395 = vrot.slane %v1394, 2
    %v1396 = vadd.f32 %v1394, %v1395
    %v1397 = vrot.slane %v1396, 1
    %v1398 = vadd.f32 %v1396, %v1397
    %v1399 = vmul.f32 %v1377, 0.5
    %v1400 = vmul.f32 %v1384, 0.5
    %v1401 = vmul.f32 %v1391, 0.5
    %v1402 = vmul.f32 %v1398, 0.5
    %v1403 = vld [vmem:[%s5 + $0xa] sm:$0xf]
    %v1404 = vadd.f32 %v1399, 1e-05
    %v1405 = vadd.f32 %v1400, 1e-05
    %v1406 = vadd.f32 %v1401, 1e-05
    %v1407 = vadd.f32 %v1402, 1e-05
    %v1408 = vrsqrt.pop %v1404
    %v1409 = vmul.f32 %v1408, %v1404
    %v1410 = vmul.f32 %v1409, %v1408
    %v1411 = vmul.f32 0.5, %v1410
    %v1412 = vsub.f32 1.5, %v1411
    %v1413 = vmul.f32 %v1408, %v1412
    %vm1414 = vweird.f32 %v1404
    %vm1415 = vweird.f32 %v1408
    %vm1416 = vmor %vm1414, %vm1415
    %v1417 = vsel %vm1416, %v1408, %v1413
    %v1418 = vrsqrt.pop %v1405
    %v1419 = vmul.f32 %v1418, %v1405
    %v1420 = vmul.f32 %v1419, %v1418
    %v1421 = vmul.f32 0.5, %v1420
    %v1422 = vsub.f32 1.5, %v1421
    %v1423 = vmul.f32 %v1418, %v1422
    %vm1424 = vweird.f32 %v1405
    %vm1425 = vweird.f32 %v1418
    %vm1426 = vmor %vm1424, %vm1425
    %v1427 = vsel %vm1426, %v1418, %v1423
    %v1428 = vrsqrt.pop %v1406
    %v1429 = vmul.f32 %v1428, %v1406
    %v1430 = vmul.f32 %v1429, %v1428
    %v1431 = vmul.f32 0.5, %v1430
    %v1432 = vsub.f32 1.5, %v1431
    %v1433 = vmul.f32 %v1428, %v1432
    %vm1434 = vweird.f32 %v1406
    %vm1435 = vweird.f32 %v1428
    %vm1436 = vmor %vm1434, %vm1435
    %v1437 = vsel %vm1436, %v1428, %v1433
    %v1438 = vrsqrt.pop %v1407
    %v1439 = vmul.f32 %v1438, %v1407
    %v1440 = vmul.f32 %v1439, %v1438
    %v1441 = vmul.f32 0.5, %v1440
    %v1442 = vsub.f32 1.5, %v1441
    %v1443 = vmul.f32 %v1438, %v1442
    %vm1444 = vweird.f32 %v1407
    %vm1445 = vweird.f32 %v1438
    %vm1446 = vmor %vm1444, %vm1445
    %v1447 = vsel %vm1446, %v1438, %v1443
    %v1452 = vrot.slane %v1427, 7
    %v1453 = vrot.slane %v1437, 6
    %v1454 = vrot.slane %v1447, 5
    %v1455 = vsel %vm186, %v1417, %v1452
    %v1456 = vsel %vm188, %v1453, %v1454
    %v1457 = vsel %vm44, %v1455, %v1456
    %v1459 = vmul.f32 %v1403, %v1457
    %v1461 = vperm.slane %v1459, 0
    %v1462 = vperm.slane %v1459, 1
    %v1463 = vperm.slane %v1459, 2
    %v1464 = vperm.slane %v1459, 3
    %v1465 = vrot.slane %v1462, 6
    %v1466 = vrot.slane %v1463, 4
    %v1467 = vrot.slane %v1464, 2
    %v1468 = vsel %vm44, %v1461, %v1465
    %v1469 = vsel %vm85, %v1466, %v1467
    %v1470 = vsel %vm87, %v1468, %v1469
    %v1472 = vmul.f32 %v1359, %v1470
    %v1473 = vld [vmem:[%s6 + $0xa] sm:$0xf]
    %v1475 = vperm.slane %v1473, 0
    %v1476 = vperm.slane %v1473, 1
    %v1477 = vperm.slane %v1473, 2
    %v1478 = vperm.slane %v1473, 3
    %v1479 = vrot.slane %v1476, 6
    %v1480 = vrot.slane %v1477, 4
    %v1481 = vrot.slane %v1478, 2
    %v1482 = vsel %vm44, %v1475, %v1479
    %v1483 = vsel %vm85, %v1480, %v1481
    %v1484 = vsel %vm87, %v1482, %v1483
    %v1486 = vadd.f32 %v1472, %v1484
    %1488 = vst [vmem:[#allocation1] ss:$4 sm:$0xff] %v1486
    %v1489 = vld.sshfl [vmem:[#allocation1] sm:$0xff pattern:$0x73625140]
    %v1490 = vld.sshfl [vmem:[#allocation1 + $0x8] sm:$0xff pattern:$0x73625140]
    %v1491 = vld.sshfl [vmem:[#allocation1 + $0x10] sm:$0xff pattern:$0x73625140]
    %v1492 = vld.sshfl [vmem:[#allocation1 + $0x18] sm:$0xff pattern:$0x73625140]
    %v1497 = vpack.c.bf16 %v1489, %v1489
    %v1498 = vpack.c.bf16 %v1490, %v1490
    %v1499 = vpack.c.bf16 %v1491, %v1491
    %v1500 = vpack.c.bf16 %v1492, %v1492
    %v1501 = vld [vmem:[%s7 + $0x280] sm:$0xf]
    %v1502 = vld [vmem:[%s7 + $0x284] sm:$0xf]
    %v1503 = vld [vmem:[%s7 + $0x288] sm:$0xf]
    %v1504 = vld [vmem:[%s7 + $0x28c] sm:$0xf]
    %v1505 = vld [vmem:[%s7 + $0x290] sm:$0xf]
    %v1506 = vld [vmem:[%s7 + $0x294] sm:$0xf]
    %v1507 = vld [vmem:[%s7 + $0x298] sm:$0xf]
    %v1508 = vld [vmem:[%s7 + $0x29c] sm:$0xf]
    %v1509 = vld [vmem:[%s7 + $0x2a0] sm:$0xf]
    %v1510 = vld [vmem:[%s7 + $0x2a4] sm:$0xf]
    %v1511 = vld [vmem:[%s7 + $0x2a8] sm:$0xf]
    %v1512 = vld [vmem:[%s7 + $0x2ac] sm:$0xf]
    %v1513 = vld [vmem:[%s7 + $0x2b0] sm:$0xf]
    %v1514 = vld [vmem:[%s7 + $0x2b4] sm:$0xf]
    %v1515 = vld [vmem:[%s7 + $0x2b8] sm:$0xf]
    %v1516 = vld [vmem:[%s7 + $0x2bc] sm:$0xf]
    %v1517 = vld [vmem:[%s7 + $0x2c0] sm:$0xf]
    %v1518 = vld [vmem:[%s7 + $0x2c4] sm:$0xf]
    %v1519 = vld [vmem:[%s7 + $0x2c8] sm:$0xf]
    %v1520 = vld [vmem:[%s7 + $0x2cc] sm:$0xf]
    %v1521 = vld [vmem:[%s7 + $0x2d0] sm:$0xf]
    %v1522 = vld [vmem:[%s7 + $0x2d4] sm:$0xf]
    %v1523 = vld [vmem:[%s7 + $0x2d8] sm:$0xf]
    %v1524 = vld [vmem:[%s7 + $0x2dc] sm:$0xf]
    %v1525 = vld [vmem:[%s7 + $0x2e0] sm:$0xf]
    %v1526 = vld [vmem:[%s7 + $0x2e4] sm:$0xf]
    %v1527 = vld [vmem:[%s7 + $0x2e8] sm:$0xf]
    %v1528 = vld [vmem:[%s7 + $0x2ec] sm:$0xf]
    %v1529 = vld [vmem:[%s7 + $0x2f0] sm:$0xf]
    %v1530 = vld [vmem:[%s7 + $0x2f4] sm:$0xf]
    %v1531 = vld [vmem:[%s7 + $0x2f8] sm:$0xf]
    %v1532 = vld [vmem:[%s7 + $0x2fc] sm:$0xf]
    %v1533 = vld [vmem:[%s7 + $0x300] sm:$0xf]
    %v1534 = vld [vmem:[%s7 + $0x304] sm:$0xf]
    %v1535 = vld [vmem:[%s7 + $0x308] sm:$0xf]
    %v1536 = vld [vmem:[%s7 + $0x30c] sm:$0xf]
    %v1537 = vld [vmem:[%s7 + $0x310] sm:$0xf]
    %v1538 = vld [vmem:[%s7 + $0x314] sm:$0xf]
    %v1539 = vld [vmem:[%s7 + $0x318] sm:$0xf]
    %v1540 = vld [vmem:[%s7 + $0x31c] sm:$0xf]
    %v1541 = vld [vmem:[%s7 + $0x320] sm:$0xf]
    %v1542 = vld [vmem:[%s7 + $0x324] sm:$0xf]
    %v1543 = vld [vmem:[%s7 + $0x328] sm:$0xf]
    %v1544 = vld [vmem:[%s7 + $0x32c] sm:$0xf]
    %v1545 = vld [vmem:[%s7 + $0x330] sm:$0xf]
    %v1546 = vld [vmem:[%s7 + $0x334] sm:$0xf]
    %v1547 = vld [vmem:[%s7 + $0x338] sm:$0xf]
    %v1548 = vld [vmem:[%s7 + $0x33c] sm:$0xf]
    %v1549 = vld [vmem:[%s7 + $0x340] sm:$0xf]
    %v1550 = vld [vmem:[%s7 + $0x344] sm:$0xf]
    %v1551 = vld [vmem:[%s7 + $0x348] sm:$0xf]
    %v1552 = vld [vmem:[%s7 + $0x34c] sm:$0xf]
    %v1553 = vld [vmem:[%s7 + $0x350] sm:$0xf]
    %v1554 = vld [vmem:[%s7 + $0x354] sm:$0xf]
    %v1555 = vld [vmem:[%s7 + $0x358] sm:$0xf]
    %v1556 = vld [vmem:[%s7 + $0x35c] sm:$0xf]
    %v1557 = vld [vmem:[%s7 + $0x360] sm:$0xf]
    %v1558 = vld [vmem:[%s7 + $0x364] sm:$0xf]
    %v1559 = vld [vmem:[%s7 + $0x368] sm:$0xf]
    %v1560 = vld [vmem:[%s7 + $0x36c] sm:$0xf]
    %v1561 = vld [vmem:[%s7 + $0x370] sm:$0xf]
    %v1562 = vld [vmem:[%s7 + $0x374] sm:$0xf]
    %v1563 = vld [vmem:[%s7 + $0x378] sm:$0xf]
    %v1564 = vld [vmem:[%s7 + $0x37c] sm:$0xf]
    %v1629 = vunpack.c.l.b16 %v1501
    %v1630 = vunpack.c.l.b16 %v1502
    %v1631 = vunpack.c.l.b16 %v1503
    %v1632 = vunpack.c.l.b16 %v1504
    %v1633 = vunpack.c.l.b16 %v1505
    %v1634 = vunpack.c.l.b16 %v1506
    %v1635 = vunpack.c.l.b16 %v1507
    %v1636 = vunpack.c.l.b16 %v1508
    %v1637 = vunpack.c.l.b16 %v1509
    %v1638 = vunpack.c.l.b16 %v1510
    %v1639 = vunpack.c.l.b16 %v1511
    %v1640 = vunpack.c.l.b16 %v1512
    %v1641 = vunpack.c.l.b16 %v1513
    %v1642 = vunpack.c.l.b16 %v1514
    %v1643 = vunpack.c.l.b16 %v1515
    %v1644 = vunpack.c.l.b16 %v1516
    %v1645 = vunpack.c.l.b16 %v1517
    %v1646 = vunpack.c.l.b16 %v1518
    %v1647 = vunpack.c.l.b16 %v1519
    %v1648 = vunpack.c.l.b16 %v1520
    %v1649 = vunpack.c.l.b16 %v1521
    %v1650 = vunpack.c.l.b16 %v1522
    %v1651 = vunpack.c.l.b16 %v1523
    %v1652 = vunpack.c.l.b16 %v1524
    %v1653 = vunpack.c.l.b16 %v1525
    %v1654 = vunpack.c.l.b16 %v1526
    %v1655 = vunpack.c.l.b16 %v1527
    %v1656 = vunpack.c.l.b16 %v1528
    %v1657 = vunpack.c.l.b16 %v1529
    %v1658 = vunpack.c.l.b16 %v1530
    %v1659 = vunpack.c.l.b16 %v1531
    %v1660 = vunpack.c.l.b16 %v1532
    %v1661 = vunpack.c.l.b16 %v1533
    %v1662 = vunpack.c.l.b16 %v1534
    %v1663 = vunpack.c.l.b16 %v1535
    %v1664 = vunpack.c.l.b16 %v1536
    %v1665 = vunpack.c.l.b16 %v1537
    %v1666 = vunpack.c.l.b16 %v1538
    %v1667 = vunpack.c.l.b16 %v1539
    %v1668 = vunpack.c.l.b16 %v1540
    %v1669 = vunpack.c.l.b16 %v1541
    %v1670 = vunpack.c.l.b16 %v1542
    %v1671 = vunpack.c.l.b16 %v1543
    %v1672 = vunpack.c.l.b16 %v1544
    %v1673 = vunpack.c.l.b16 %v1545
    %v1674 = vunpack.c.l.b16 %v1546
    %v1675 = vunpack.c.l.b16 %v1547
    %v1676 = vunpack.c.l.b16 %v1548
    %v1677 = vunpack.c.l.b16 %v1549
    %v1678 = vunpack.c.l.b16 %v1550
    %v1679 = vunpack.c.l.b16 %v1551
    %v1680 = vunpack.c.l.b16 %v1552
    %v1681 = vunpack.c.l.b16 %v1553
    %v1682 = vunpack.c.l.b16 %v1554
    %v1683 = vunpack.c.l.b16 %v1555
    %v1684 = vunpack.c.l.b16 %v1556
    %v1685 = vunpack.c.l.b16 %v1557
    %v1686 = vunpack.c.l.b16 %v1558
    %v1687 = vunpack.c.l.b16 %v1559
    %v1688 = vunpack.c.l.b16 %v1560
    %v1689 = vunpack.c.l.b16 %v1561
    %v1690 = vunpack.c.l.b16 %v1562
    %v1691 = vunpack.c.l.b16 %v1563
    %v1692 = vunpack.c.l.b16 %v1564
    %v1693 = vpack.c.b16 %v1630, %v1629
    %v1694 = vpack.c.b16 %v1632, %v1631
    %v1695 = vpack.c.b16 %v1634, %v1633
    %v1696 = vpack.c.b16 %v1636, %v1635
    %v1697 = vpack.c.b16 %v1638, %v1637
    %v1698 = vpack.c.b16 %v1640, %v1639
    %v1699 = vpack.c.b16 %v1642, %v1641
    %v1700 = vpack.c.b16 %v1644, %v1643
    %v1701 = vpack.c.b16 %v1646, %v1645
    %v1702 = vpack.c.b16 %v1648, %v1647
    %v1703 = vpack.c.b16 %v1650, %v1649
    %v1704 = vpack.c.b16 %v1652, %v1651
    %v1705 = vpack.c.b16 %v1654, %v1653
    %v1706 = vpack.c.b16 %v1656, %v1655
    %v1707 = vpack.c.b16 %v1658, %v1657
    %v1708 = vpack.c.b16 %v1660, %v1659
    %v1709 = vpack.c.b16 %v1662, %v1661
    %v1710 = vpack.c.b16 %v1664, %v1663
    %v1711 = vpack.c.b16 %v1666, %v1665
    %v1712 = vpack.c.b16 %v1668, %v1667
    %v1713 = vpack.c.b16 %v1670, %v1669
    %v1714 = vpack.c.b16 %v1672, %v1671
    %v1715 = vpack.c.b16 %v1674, %v1673
    %v1716 = vpack.c.b16 %v1676, %v1675
    %v1717 = vpack.c.b16 %v1678, %v1677
    %v1718 = vpack.c.b16 %v1680, %v1679
    %v1719 = vpack.c.b16 %v1682, %v1681
    %v1720 = vpack.c.b16 %v1684, %v1683
    %v1721 = vpack.c.b16 %v1686, %v1685
    %v1722 = vpack.c.b16 %v1688, %v1687
    %v1723 = vpack.c.b16 %v1690, %v1689
    %v1724 = vpack.c.b16 %v1692, %v1691
    %1757 = vmatpush.bf16.msra.mxu0 %v1700
    %1758 = vmatpush.bf16.msra.mxu0 %v1699
    %1759 = vmatpush.bf16.msra.mxu0 %v1698
    %1760 = vmatpush.bf16.msra.mxu0 %v1697
    %1761 = vmatpush.bf16.msra.mxu0 %v1696
    %1762 = vmatpush.bf16.msra.mxu0 %v1695
    %1763 = vmatpush.bf16.msra.mxu0 %v1694
    %1764 = vmatpush.bf16.msra.mxu0 %v1693
    %1765 = vmatmul.bf16.gmra.mxu0 %v1497
    %v1766 = vpop.f32.mrf.mxu0
    %v1767 = vadd.f32 0.0, %v1766
    %v1768 = vpop.f32.mrf.mxu0
    %1769 = vdwg.mxu0
    %1770 = vmatpush.bf16.msra.mxu0 %v1708
    %1771 = vmatpush.bf16.msra.mxu0 %v1707
    %1772 = vmatpush.bf16.msra.mxu0 %v1706
    %1773 = vmatpush.bf16.msra.mxu0 %v1705
    %1774 = vmatpush.bf16.msra.mxu0 %v1704
    %1775 = vmatpush.bf16.msra.mxu0 %v1703
    %1776 = vmatpush.bf16.msra.mxu0 %v1702
    %1777 = vmatpush.bf16.msra.mxu0 %v1701
    %1778 = vmatmul.bf16.gmra.mxu0 %v1498
    %v1779 = vpop.f32.mrf.mxu0
    %v1780 = vadd.f32 %v1767, %v1779
    %v1781 = vpop.f32.mrf.mxu0
    %1782 = vdwg.mxu0
    %1783 = vmatpush.bf16.msra.mxu0 %v1716
    %1784 = vmatpush.bf16.msra.mxu0 %v1715
    %1785 = vmatpush.bf16.msra.mxu0 %v1714
    %1786 = vmatpush.bf16.msra.mxu0 %v1713
    %1787 = vmatpush.bf16.msra.mxu0 %v1712
    %1788 = vmatpush.bf16.msra.mxu0 %v1711
    %1789 = vmatpush.bf16.msra.mxu0 %v1710
    %1790 = vmatpush.bf16.msra.mxu0 %v1709
    %1791 = vmatmul.bf16.gmra.mxu0 %v1499
    %v1792 = vpop.f32.mrf.mxu0
    %v1793 = vadd.f32 %v1780, %v1792
    %v1794 = vpop.f32.mrf.mxu0
    %1795 = vdwg.mxu0
    %1796 = vmatpush.bf16.msra.mxu0 %v1724
    %1797 = vmatpush.bf16.msra.mxu0 %v1723
    %1798 = vmatpush.bf16.msra.mxu0 %v1722
    %1799 = vmatpush.bf16.msra.mxu0 %v1721
    %1800 = vmatpush.bf16.msra.mxu0 %v1720
    %1801 = vmatpush.bf16.msra.mxu0 %v1719
    %1802 = vmatpush.bf16.msra.mxu0 %v1718
    %1803 = vmatpush.bf16.msra.mxu0 %v1717
    %1804 = vmatmul.bf16.gmra.mxu0 %v1500
    %v1805 = vpop.f32.mrf.mxu0
    %v1806 = vadd.f32 %v1793, %v1805
    %v1807 = vpop.f32.mrf.mxu0
    %1808 = vdwg.mxu0
    %v1809 = vadd.f32 %v1304, %v1806
    %v1810 = vld [vmem:[%s4] sm:$0x3]
    %v1811 = vsel %vm44, %v1810, 0.0
    %v1812 = vrot.slane %v1811, 4
    %v1813 = vadd.f32 %v1811, %v1812
    %v1814 = vrot.slane %v1813, 2
    %v1815 = vadd.f32 %v1813, %v1814
    %v1816 = vrot.slane %v1815, 1
    %v1817 = vadd.f32 %v1815, %v1816
    %v1818 = vmul.f32 %v1817, 0.5
    %v1819 = vsub.f32 %v1810, %v1818
    %v1820 = vmul.f32 %v1819, %v1819
    %v1821 = vsel %vm44, %v1820, 0.0
    %v1822 = vrot.slane %v1821, 4
    %v1823 = vadd.f32 %v1821, %v1822
    %v1824 = vrot.slane %v1823, 2
    %v1825 = vadd.f32 %v1823, %v1824
    %v1826 = vrot.slane %v1825, 1
    %v1827 = vadd.f32 %v1825, %v1826
    %v1828 = vmul.f32 %v1827, 0.5
    %v1829 = vld [vmem:[%s5 + $0xe] sm:$0x1]
    %v1830 = vadd.f32 %v1828, 1e-05
    %v1831 = vrsqrt.pop %v1830
    %v1832 = vmul.f32 %v1831, %v1830
    %v1833 = vmul.f32 %v1832, %v1831
    %v1834 = vmul.f32 0.5, %v1833
    %v1835 = vsub.f32 1.5, %v1834
    %v1836 = vmul.f32 %v1831, %v1835
    %vm1837 = vweird.f32 %v1830
    %vm1838 = vweird.f32 %v1831
    %vm1839 = vmor %vm1837, %vm1838
    %v1840 = vsel %vm1839, %v1831, %v1836
    %v1841 = vmul.f32 %v1829, %v1840
    %v1843 = vperm.slane %v1841, 0
    %v1845 = vmul.f32 %v1819, %v1843
    %v1846 = vld [vmem:[%s6 + $0xe] sm:$0x1]
    %v1848 = vperm.slane %v1846, 0
    %v1850 = vadd.f32 %v1845, %v1848
    %v1851 = vpack.c.bf16 %v1850, %v1850
    %v1852 = vld [vmem:[%s7 + $0x380] sm:$0xf]
    %v1853 = vld [vmem:[%s7 + $0x384] sm:$0xf]
    %v1854 = vld [vmem:[%s7 + $0x388] sm:$0xf]
    %v1855 = vld [vmem:[%s7 + $0x38c] sm:$0xf]
    %v1856 = vld [vmem:[%s7 + $0x390] sm:$0xf]
    %v1857 = vld [vmem:[%s7 + $0x394] sm:$0xf]
    %v1858 = vld [vmem:[%s7 + $0x398] sm:$0xf]
    %v1859 = vld [vmem:[%s7 + $0x39c] sm:$0xf]
    %v1860 = vld [vmem:[%s7 + $0x3a0] sm:$0xf]
    %v1861 = vld [vmem:[%s7 + $0x3a4] sm:$0xf]
    %v1862 = vld [vmem:[%s7 + $0x3a8] sm:$0xf]
    %v1863 = vld [vmem:[%s7 + $0x3ac] sm:$0xf]
    %v1864 = vld [vmem:[%s7 + $0x3b0] sm:$0xf]
    %v1865 = vld [vmem:[%s7 + $0x3b4] sm:$0xf]
    %v1866 = vld [vmem:[%s7 + $0x3b8] sm:$0xf]
    %v1867 = vld [vmem:[%s7 + $0x3bc] sm:$0xf]
    %v1884 = vunpack.c.l.b16 %v1852
    %v1885 = vunpack.c.l.b16 %v1853
    %v1886 = vunpack.c.l.b16 %v1854
    %v1887 = vunpack.c.l.b16 %v1855
    %v1888 = vunpack.c.l.b16 %v1856
    %v1889 = vunpack.c.l.b16 %v1857
    %v1890 = vunpack.c.l.b16 %v1858
    %v1891 = vunpack.c.l.b16 %v1859
    %v1892 = vunpack.c.l.b16 %v1860
    %v1893 = vunpack.c.l.b16 %v1861
    %v1894 = vunpack.c.l.b16 %v1862
    %v1895 = vunpack.c.l.b16 %v1863
    %v1896 = vunpack.c.l.b16 %v1864
    %v1897 = vunpack.c.l.b16 %v1865
    %v1898 = vunpack.c.l.b16 %v1866
    %v1899 = vunpack.c.l.b16 %v1867
    %v1900 = vpack.c.b16 %v1885, %v1884
    %v1901 = vpack.c.b16 %v1887, %v1886
    %v1902 = vpack.c.b16 %v1889, %v1888
    %v1903 = vpack.c.b16 %v1891, %v1890
    %v1904 = vpack.c.b16 %v1893, %v1892
    %v1905 = vpack.c.b16 %v1895, %v1894
    %v1906 = vpack.c.b16 %v1897, %v1896
    %v1907 = vpack.c.b16 %v1899, %v1898
    %1916 = vmatpush.bf16.msra.mxu0 %v1907
    %1917 = vmatpush.bf16.msra.mxu0 %v1906
    %1918 = vmatpush.bf16.msra.mxu0 %v1905
    %1919 = vmatpush.bf16.msra.mxu0 %v1904
    %1920 = vmatpush.bf16.msra.mxu0 %v1903
    %1921 = vmatpush.bf16.msra.mxu0 %v1902
    %1922 = vmatpush.bf16.msra.mxu0 %v1901
    %1923 = vmatpush.bf16.msra.mxu0 %v1900
    %1924 = vmatmul.bf16.gmra.mxu0 %v1851
    %v1925 = vpop.f32.mrf.mxu0
    %v1926 = vadd.f32 0.0, %v1925
    %v1927 = vpop.f32.mrf.mxu0
    %1928 = vdwg.mxu0
    %v1929 = vadd.f32 %v1809, %v1926
    %v1930 = vpack.c.bf16 %v1810, %v1810
    %v1931 = vld [vmem:[%s7 + $0x3c0] sm:$0xf]
    %v1932 = vld [vmem:[%s7 + $0x3c4] sm:$0xf]
    %v1933 = vld [vmem:[%s7 + $0x3c8] sm:$0xf]
    %v1934 = vld [vmem:[%s7 + $0x3cc] sm:$0xf]
    %v1935 = vld [vmem:[%s7 + $0x3d0] sm:$0xf]
    %v1936 = vld [vmem:[%s7 + $0x3d4] sm:$0xf]
    %v1937 = vld [vmem:[%s7 + $0x3d8] sm:$0xf]
    %v1938 = vld [vmem:[%s7 + $0x3dc] sm:$0xf]
    %v1939 = vld [vmem:[%s7 + $0x3e0] sm:$0xf]
    %v1940 = vld [vmem:[%s7 + $0x3e4] sm:$0xf]
    %v1941 = vld [vmem:[%s7 + $0x3e8] sm:$0xf]
    %v1942 = vld [vmem:[%s7 + $0x3ec] sm:$0xf]
    %v1943 = vld [vmem:[%s7 + $0x3f0] sm:$0xf]
    %v1944 = vld [vmem:[%s7 + $0x3f4] sm:$0xf]
    %v1945 = vld [vmem:[%s7 + $0x3f8] sm:$0xf]
    %v1946 = vld [vmem:[%s7 + $0x3fc] sm:$0xf]
    %v1963 = vunpack.c.l.b16 %v1931
    %v1964 = vunpack.c.l.b16 %v1932
    %v1965 = vunpack.c.l.b16 %v1933
    %v1966 = vunpack.c.l.b16 %v1934
    %v1967 = vunpack.c.l.b16 %v1935
    %v1968 = vunpack.c.l.b16 %v1936
    %v1969 = vunpack.c.l.b16 %v1937
    %v1970 = vunpack.c.l.b16 %v1938
    %v1971 = vunpack.c.l.b16 %v1939
    %v1972 = vunpack.c.l.b16 %v1940
    %v1973 = vunpack.c.l.b16 %v1941
    %v1974 = vunpack.c.l.b16 %v1942
    %v1975 = vunpack.c.l.b16 %v1943
    %v1976 = vunpack.c.l.b16 %v1944
    %v1977 = vunpack.c.l.b16 %v1945
    %v1978 = vunpack.c.l.b16 %v1946
    %v1979 = vpack.c.b16 %v1964, %v1963
    %v1980 = vpack.c.b16 %v1966, %v1965
    %v1981 = vpack.c.b16 %v1968, %v1967
    %v1982 = vpack.c.b16 %v1970, %v1969
    %v1983 = vpack.c.b16 %v1972, %v1971
    %v1984 = vpack.c.b16 %v1974, %v1973
    %v1985 = vpack.c.b16 %v1976, %v1975
    %v1986 = vpack.c.b16 %v1978, %v1977
    %1995 = vmatpush.bf16.msra.mxu0 %v1986
    %1996 = vmatpush.bf16.msra.mxu0 %v1985
    %1997 = vmatpush.bf16.msra.mxu0 %v1984
    %1998 = vmatpush.bf16.msra.mxu0 %v1983
    %1999 = vmatpush.bf16.msra.mxu0 %v1982
    %2000 = vmatpush.bf16.msra.mxu0 %v1981
    %2001 = vmatpush.bf16.msra.mxu0 %v1980
    %2002 = vmatpush.bf16.msra.mxu0 %v1979
    %2003 = vmatmul.bf16.gmra.mxu0 %v1930
    %v2004 = vpop.f32.mrf.mxu0
    %v2005 = vadd.f32 0.0, %v2004
    %v2006 = vpop.f32.mrf.mxu0
    %2007 = vdwg.mxu0
    %v2008 = vadd.f32 %v1929, %v2005
    %v2009 = vld [vmem:[%s8] sm:$0x1]
    %v2011 = vperm.slane %v2009, 0
    %v2013 = vadd.f32 %v2008, %v2011
    %v2014 = vmul.f32 %v2013, 0.16666667
    %2015 = vst [vmem:[#allocation2] sm:$0x3] %v2014
    // Predicated region
    $region38: #{source_model_forward.1} parent=1 // pred_check
      _
    $region39: #{source_model_forward.1} parent=1 // pred_check_branch
      %2017 = sbr.rel (0) target = $region41
    $region40: #{source_model_forward.1} parent=1 // pred_region
      %2019 = vsyncadd [#allocation3], 0
      %s2021 = sshll.u32 [#allocation2], 4
      %s2022 = int_to_ptr.vmem [resolvable:$true] %s2021
      %s2023 = sshll.u32 %s9, 4
      %s2024 = int_to_ptr.hbm [resolvable:$true] %s2023
      %2026 = dma.vmem_to_hbm [thread:$0]  %s2022, 32, %s2024, [#allocation3]
    $region41: #{source_model_forward.1} parent=1 // pred_fallthru
      _
    // Predicated region
    $region42: #{source_model_forward.1} parent=1 // pred_check
      _
    $region43: #{source_model_forward.1} parent=1 // pred_check_branch
      %2028 = sbr.rel (0) target = $region45
    $region44: #{source_model_forward.1} parent=1 // pred_region
      %2030 = dma.done [#allocation3], 32
    $region45: #{source_model_forward.1} parent=1 // pred_fallthru
      _
    %2031 = vsyncpa [#allocation3], 1

</llo_original>
